<compile_context>
chip_gen: v6e
topology: v6e:2x2x1
jax: 0.10.0
libtpu: 0.0.40
codegen_flags: <defaults>
</compile_context>

<pallas_src>
import math

import jax
import jax.numpy as jnp
from jax import lax
from jax.experimental import pallas as pl
from jax.experimental.pallas import tpu as pltpu

# Model dims from the PyTorch spec.
d_k = d_v = 3
d_model = 6
n_heads = 2

_SCALE = 1.0 / math.sqrt(d_k)   # python float -> inlined literal
_NEG_INF = -1e9
_LN_EPS = 1e-5


# ---------------------------------------------------------------------------
# Fused MHA kernel: one grid step == one batch element (all heads).
#   xq/xk/xv : (1, S, d_model)      mask : (1, S_q, S_k) int32
#   wq/wk    : (H, d_k, d_model)    wv   : (H, d_v, d_model)
#   wfc      : (H, d_model, d_v)    g/b  : (1, d_model)
#   o        : (1, S_q, d_model)
# ---------------------------------------------------------------------------
def _mha_kernel(xq_ref, xk_ref, xv_ref, mask_ref,
                wq_ref, wk_ref, wv_ref, wfc_ref, g_ref, b_ref, o_ref):
    xq = xq_ref[0].astype(jnp.float32)          # (S_q, d_model) residual too
    xk = xk_ref[0].astype(jnp.float32)          # (S_k, d_model)
    xv = xv_ref[0].astype(jnp.float32)          # (S_k, d_model)
    masked = mask_ref[0] != 0                   # (S_q, S_k) bool

    contract_last = (((1,), (1,)), ((), ()))    # a[.., i] * b[.., i]

    out = None
    for h in range(n_heads):                    # H = 2, fully unrolled
        # Per-head projections: x @ W_h^T on the MXU, f32 accumulation.
        q = lax.dot_general(xq, wq_ref[h], contract_last,
                            preferred_element_type=jnp.float32) * _SCALE
        k = lax.dot_general(xk, wk_ref[h], contract_last,
                            preferred_element_type=jnp.float32)
        v = lax.dot_general(xv, wv_ref[h], contract_last,
                            preferred_element_type=jnp.float32)

        # scores = (Q / sqrt(d_k)) @ K^T, masked_fill(-1e9).
        s = lax.dot_general(q, k, contract_last,
                            preferred_element_type=jnp.float32)   # (S_q, S_k)
        s = jnp.where(masked, _NEG_INF, s)

        # Numerically stable softmax; normalization deferred to after attn @ V
        # so the divide touches (S_q, d_v) instead of (S_q, S_k).
        m = jnp.max(s, axis=-1, keepdims=True)
        e = jnp.exp(s - m)
        denom = jnp.sum(e, axis=-1, keepdims=True)
        prob = jnp.dot(e, v, preferred_element_type=jnp.float32) / denom

        # Output projection absorbs the head re-concat:
        #   out[q, m] += sum_d prob[q, d] * W_fc[m, h*d_v + d]
        o_h = lax.dot_general(prob, wfc_ref[h], contract_last,
                              preferred_element_type=jnp.float32)  # (S_q, d_model)
        out = o_h if out is None else out + o_h

    # residual + LayerNorm (eps = 1e-5, biased variance, like nn.LayerNorm).
    x = xq + out
    mean = jnp.mean(x, axis=-1, keepdims=True)
    xc = x - mean
    var = jnp.mean(xc * xc, axis=-1, keepdims=True)
    inv = lax.rsqrt(var + _LN_EPS)
    y = xc * inv * g_ref[...] + b_ref[...]
    o_ref[0] = y.astype(o_ref.dtype)


# ---------------------------------------------------------------------------
# Full MultiHeadAttention forward (matches the PyTorch module semantics).
# ---------------------------------------------------------------------------
def multi_head_attention(params, input_Q, input_K, input_V, attn_mask):
    B, S_q, _ = input_Q.shape
    S_k = input_K.shape[1]

    # Pre-split weights per head (wrapper-side layout plumbing, no compute).
    wq = params["W_Q"].reshape(n_heads, d_k, d_model)
    wk = params["W_K"].reshape(n_heads, d_k, d_model)
    wv = params["W_V"].reshape(n_heads, d_v, d_model)
    wfc = params["W_fc"].reshape(d_model, n_heads, d_v).transpose(1, 0, 2)
    mask = attn_mask.astype(jnp.int32)

    return pl.pallas_call(
        _mha_kernel,
        out_shape=jax.ShapeDtypeStruct((B, S_q, d_model), input_Q.dtype),
        grid=(B,),
        in_specs=[
            pl.BlockSpec((1, S_q, d_model), lambda b: (b, 0, 0)),
            pl.BlockSpec((1, S_k, d_model), lambda b: (b, 0, 0)),
            pl.BlockSpec((1, S_k, d_model), lambda b: (b, 0, 0)),
            pl.BlockSpec((1, S_q, S_k), lambda b: (b, 0, 0)),
            pl.BlockSpec((n_heads, d_k, d_model), lambda b: (0, 0, 0)),
            pl.BlockSpec((n_heads, d_k, d_model), lambda b: (0, 0, 0)),
            pl.BlockSpec((n_heads, d_v, d_model), lambda b: (0, 0, 0)),
            pl.BlockSpec((n_heads, d_model, d_v), lambda b: (0, 0, 0)),
            pl.BlockSpec((1, d_model), lambda b: (0, 0)),
            pl.BlockSpec((1, d_model), lambda b: (0, 0)),
        ],
        out_specs=pl.BlockSpec((1, S_q, d_model), lambda b: (b, 0, 0)),
        compiler_params=pltpu.CompilerParams(dimension_semantics=("parallel",)),
    )(input_Q, input_K, input_V, mask, wq, wk, wv, wfc,
      params["gamma"], params["beta"])


# ---------------------------------------------------------------------------
# Pure-JAX reference for verification.
# ---------------------------------------------------------------------------
def _reference(params, input_Q, input_K, input_V, attn_mask):
    B, S_q, _ = input_Q.shape
    S_k = input_K.shape[1]
    Q = (input_Q @ params["W_Q"].T).reshape(B, S_q, n_heads, d_k).transpose(0, 2, 1, 3)
    K = (input_K @ params["W_K"].T).reshape(B, S_k, n_heads, d_k).transpose(0, 2, 1, 3)
    V = (input_V @ params["W_V"].T).reshape(B, S_k, n_heads, d_v).transpose(0, 2, 1, 3)
    scores = jnp.einsum("bhqd,bhkd->bhqk", Q, K) / math.sqrt(d_k)
    scores = jnp.where(attn_mask[:, None, :, :], -1e9, scores)
    attn = jax.nn.softmax(scores, axis=-1)
    prob = jnp.einsum("bhqk,bhkd->bhqd", attn, V)
    prob = prob.transpose(0, 2, 1, 3).reshape(B, S_q, n_heads * d_v)
    x = input_Q + prob @ params["W_fc"].T
    mean = x.mean(-1, keepdims=True)
    var = ((x - mean) ** 2).mean(-1, keepdims=True)
    return ((x - mean) / jnp.sqrt(var + _LN_EPS)) * params["gamma"].reshape(-1) \
        + params["beta"].reshape(-1)


def _init_linear(key, out_f, in_f):
    bound = 1.0 / math.sqrt(in_f)
    return jax.random.uniform(key, (out_f, in_f), jnp.float32, -bound, bound)


if __name__ == "__main__":
    B, S = 2, 8

    key = jax.random.PRNGKey(0)
    k_x, k_q, k_k, k_v, k_fc = jax.random.split(key, 5)

    x = jax.random.normal(k_x, (B, S, d_model), dtype=jnp.float32)
    params = {
        "W_Q": _init_linear(k_q, n_heads * d_k, d_model),
        "W_K": _init_linear(k_k, n_heads * d_k, d_model),
        "W_V": _init_linear(k_v, n_heads * d_v, d_model),
        "W_fc": _init_linear(k_fc, d_model, n_heads * d_v),
        "gamma": jnp.ones((1, d_model), jnp.float32),
        "beta": jnp.zeros((1, d_model), jnp.float32),
    }

    # Deterministic causal-style mask: True (masked) where key index > query index.
    attn_mask = jnp.broadcast_to(
        jnp.arange(S)[None, :] > jnp.arange(S)[:, None], (B, S, S))

    out = multi_head_attention(params, x, x, x, attn_mask)
    out = jax.block_until_ready(out)

    ref = _reference(params, x, x, x, attn_mask)
    assert out.shape == (B, S, d_model)
    assert jnp.allclose(out, ref, atol=1e-4, rtol=1e-4), "mismatch vs reference"

    print("KERNEL_OK")
</pallas_src>

<mosaic_0001>
module attributes {stable_mosaic.version = 11 : i64} {
  func.func @_mha_kernel(%arg0: i32, %arg1: memref<1x8x6xf32, #tpu.memory_space<vmem>>, %arg2: memref<1x8x6xf32, #tpu.memory_space<vmem>>, %arg3: memref<1x8x6xf32, #tpu.memory_space<vmem>>, %arg4: memref<1x8x8xi32, #tpu.memory_space<vmem>>, %arg5: memref<2x3x6xf32, #tpu.memory_space<vmem>>, %arg6: memref<2x3x6xf32, #tpu.memory_space<vmem>>, %arg7: memref<2x3x6xf32, #tpu.memory_space<vmem>>, %arg8: memref<2x6x3xf32, #tpu.memory_space<vmem>>, %arg9: memref<1x6xf32, #tpu.memory_space<vmem>>, %arg10: memref<1x6xf32, #tpu.memory_space<vmem>>, %arg11: memref<1x8x6xf32, #tpu.memory_space<vmem>>) attributes {dimension_semantics = [#tpu.dimension_semantics<parallel>], iteration_bounds = array<i64: 2>, scalar_prefetch = 0 : i64, scratch_operands = 0 : i64, tpu.core_type = #tpu.core_type<tc>, window_params = [{transform_indices = @transform_0, window_bounds = array<i64: 1, 8, 6>}, {transform_indices = @transform_1, window_bounds = array<i64: 1, 8, 6>}, {transform_indices = @transform_2, window_bounds = array<i64: 1, 8, 6>}, {transform_indices = @transform_3, window_bounds = array<i64: 1, 8, 8>}, {pipeline_mode = #tpu.pipeline_mode<synchronous>, transform_indices = @transform_4, window_bounds = array<i64: 2, 3, 6>}, {pipeline_mode = #tpu.pipeline_mode<synchronous>, transform_indices = @transform_5, window_bounds = array<i64: 2, 3, 6>}, {pipeline_mode = #tpu.pipeline_mode<synchronous>, transform_indices = @transform_6, window_bounds = array<i64: 2, 3, 6>}, {pipeline_mode = #tpu.pipeline_mode<synchronous>, transform_indices = @transform_7, window_bounds = array<i64: 2, 6, 3>}, {pipeline_mode = #tpu.pipeline_mode<synchronous>, transform_indices = @transform_8, window_bounds = array<i64: 1, 6>}, {pipeline_mode = #tpu.pipeline_mode<synchronous>, transform_indices = @transform_9, window_bounds = array<i64: 1, 6>}, {transform_indices = @transform_10, window_bounds = array<i64: 1, 8, 6>}]} {
    %c0 = arith.constant 0 : index
    %c0_0 = arith.constant 0 : index
    %c0_1 = arith.constant 0 : index
    %0 = vector.load %arg1[%c0, %c0_0, %c0_1] : memref<1x8x6xf32, #tpu.memory_space<vmem>>, vector<1x8x6xf32>
    %1 = vector.shape_cast %0 : vector<1x8x6xf32> to vector<8x6xf32>
    %c0_2 = arith.constant 0 : index
    %c0_3 = arith.constant 0 : index
    %c0_4 = arith.constant 0 : index
    %2 = vector.load %arg2[%c0_2, %c0_3, %c0_4] : memref<1x8x6xf32, #tpu.memory_space<vmem>>, vector<1x8x6xf32>
    %3 = vector.shape_cast %2 : vector<1x8x6xf32> to vector<8x6xf32>
    %c0_5 = arith.constant 0 : index
    %c0_6 = arith.constant 0 : index
    %c0_7 = arith.constant 0 : index
    %4 = vector.load %arg3[%c0_5, %c0_6, %c0_7] : memref<1x8x6xf32, #tpu.memory_space<vmem>>, vector<1x8x6xf32>
    %5 = vector.shape_cast %4 : vector<1x8x6xf32> to vector<8x6xf32>
    %c0_8 = arith.constant 0 : index
    %c0_9 = arith.constant 0 : index
    %c0_10 = arith.constant 0 : index
    %6 = vector.load %arg4[%c0_8, %c0_9, %c0_10] : memref<1x8x8xi32, #tpu.memory_space<vmem>>, vector<1x8x8xi32>
    %7 = vector.shape_cast %6 : vector<1x8x8xi32> to vector<8x8xi32>
    %c0_i32 = arith.constant 0 : i32
    %8 = vector.broadcast %c0_i32 : i32 to vector<8x8xi32>
    %9 = arith.cmpi ne, %7, %8 : vector<8x8xi32>
    %c0_11 = arith.constant 0 : index
    %c0_12 = arith.constant 0 : index
    %c0_13 = arith.constant 0 : index
    %10 = vector.load %arg5[%c0_11, %c0_12, %c0_13] : memref<2x3x6xf32, #tpu.memory_space<vmem>>, vector<1x3x6xf32>
    %11 = vector.shape_cast %10 : vector<1x3x6xf32> to vector<3x6xf32>
    %cst = arith.constant dense<0.000000e+00> : vector<8x3xf32>
    %12 = tpu.matmul %1, %11, %cst {dimension_numbers = #tpu.dot_dimension_numbers<[1], [1], [0], [0], [0, 0, 1, 0], [], []>} : vector<8x6xf32>, vector<3x6xf32>, vector<8x3xf32> -> vector<8x3xf32>
    %cst_14 = arith.constant 0.577350259 : f32
    %13 = vector.broadcast %cst_14 : f32 to vector<8x3xf32>
    %14 = arith.mulf %12, %13 : vector<8x3xf32>
    %c0_15 = arith.constant 0 : index
    %c0_16 = arith.constant 0 : index
    %c0_17 = arith.constant 0 : index
    %15 = vector.load %arg6[%c0_15, %c0_16, %c0_17] : memref<2x3x6xf32, #tpu.memory_space<vmem>>, vector<1x3x6xf32>
    %16 = vector.shape_cast %15 : vector<1x3x6xf32> to vector<3x6xf32>
    %cst_18 = arith.constant dense<0.000000e+00> : vector<8x3xf32>
    %17 = tpu.matmul %3, %16, %cst_18 {dimension_numbers = #tpu.dot_dimension_numbers<[1], [1], [0], [0], [0, 0, 1, 0], [], []>} : vector<8x6xf32>, vector<3x6xf32>, vector<8x3xf32> -> vector<8x3xf32>
    %c0_19 = arith.constant 0 : index
    %c0_20 = arith.constant 0 : index
    %c0_21 = arith.constant 0 : index
    %18 = vector.load %arg7[%c0_19, %c0_20, %c0_21] : memref<2x3x6xf32, #tpu.memory_space<vmem>>, vector<1x3x6xf32>
    %19 = vector.shape_cast %18 : vector<1x3x6xf32> to vector<3x6xf32>
    %cst_22 = arith.constant dense<0.000000e+00> : vector<8x3xf32>
    %20 = tpu.matmul %5, %19, %cst_22 {dimension_numbers = #tpu.dot_dimension_numbers<[1], [1], [0], [0], [0, 0, 1, 0], [], []>} : vector<8x6xf32>, vector<3x6xf32>, vector<8x3xf32> -> vector<8x3xf32>
    %cst_23 = arith.constant dense<0.000000e+00> : vector<8x8xf32>
    %21 = tpu.matmul %14, %17, %cst_23 {dimension_numbers = #tpu.dot_dimension_numbers<[1], [1], [0], [0], [0, 0, 1, 0], [], []>} : vector<8x3xf32>, vector<8x3xf32>, vector<8x8xf32> -> vector<8x8xf32>
    %cst_24 = arith.constant -1.000000e+09 : f32
    %22 = vector.broadcast %cst_24 : f32 to vector<8x8xf32>
    %23 = arith.select %9, %22, %21 : vector<8x8xi1>, vector<8x8xf32>
    %cst_25 = arith.constant dense<0xFF800000> : vector<8xf32>
    %24 = vector.multi_reduction <maximumf>, %23, %cst_25 [1] : vector<8x8xf32> to vector<8xf32>
    %25 = vector.shape_cast %24 : vector<8xf32> to vector<8x1xf32>
    %26 = vector.broadcast %25 : vector<8x1xf32> to vector<8x8xf32>
    %27 = arith.subf %23, %26 : vector<8x8xf32>
    %28 = math.exp %27 : vector<8x8xf32>
    %cst_26 = arith.constant dense<0.000000e+00> : vector<8xf32>
    %29 = vector.multi_reduction <add>, %28, %cst_26 [1] : vector<8x8xf32> to vector<8xf32>
    %30 = vector.shape_cast %29 : vector<8xf32> to vector<8x1xf32>
    %cst_27 = arith.constant dense<0.000000e+00> : vector<8x3xf32>
    %31 = tpu.matmul %28, %20, %cst_27 {dimension_numbers = #tpu.dot_dimension_numbers<[1], [0], [0], [1], [0, 0, 1, 1], [], []>} : vector<8x8xf32>, vector<8x3xf32>, vector<8x3xf32> -> vector<8x3xf32>
    %32 = vector.broadcast %30 : vector<8x1xf32> to vector<8x3xf32>
    %33 = arith.divf %31, %32 : vector<8x3xf32>
    %c0_28 = arith.constant 0 : index
    %c0_29 = arith.constant 0 : index
    %c0_30 = arith.constant 0 : index
    %34 = vector.load %arg8[%c0_28, %c0_29, %c0_30] : memref<2x6x3xf32, #tpu.memory_space<vmem>>, vector<1x6x3xf32>
    %35 = vector.shape_cast %34 : vector<1x6x3xf32> to vector<6x3xf32>
    %cst_31 = arith.constant dense<0.000000e+00> : vector<8x6xf32>
    %36 = tpu.matmul %33, %35, %cst_31 {dimension_numbers = #tpu.dot_dimension_numbers<[1], [1], [0], [0], [0, 0, 1, 0], [], []>} : vector<8x3xf32>, vector<6x3xf32>, vector<8x6xf32> -> vector<8x6xf32>
    %c1 = arith.constant 1 : index
    %c0_32 = arith.constant 0 : index
    %c0_33 = arith.constant 0 : index
    %37 = vector.load %arg5[%c1, %c0_32, %c0_33] : memref<2x3x6xf32, #tpu.memory_space<vmem>>, vector<1x3x6xf32>
    %38 = vector.shape_cast %37 : vector<1x3x6xf32> to vector<3x6xf32>
    %cst_34 = arith.constant dense<0.000000e+00> : vector<8x3xf32>
    %39 = tpu.matmul %1, %38, %cst_34 {dimension_numbers = #tpu.dot_dimension_numbers<[1], [1], [0], [0], [0, 0, 1, 0], [], []>} : vector<8x6xf32>, vector<3x6xf32>, vector<8x3xf32> -> vector<8x3xf32>
    %cst_35 = arith.constant 0.577350259 : f32
    %40 = vector.broadcast %cst_35 : f32 to vector<8x3xf32>
    %41 = arith.mulf %39, %40 : vector<8x3xf32>
    %c1_36 = arith.constant 1 : index
    %c0_37 = arith.constant 0 : index
    %c0_38 = arith.constant 0 : index
    %42 = vector.load %arg6[%c1_36, %c0_37, %c0_38] : memref<2x3x6xf32, #tpu.memory_space<vmem>>, vector<1x3x6xf32>
    %43 = vector.shape_cast %42 : vector<1x3x6xf32> to vector<3x6xf32>
    %cst_39 = arith.constant dense<0.000000e+00> : vector<8x3xf32>
    %44 = tpu.matmul %3, %43, %cst_39 {dimension_numbers = #tpu.dot_dimension_numbers<[1], [1], [0], [0], [0, 0, 1, 0], [], []>} : vector<8x6xf32>, vector<3x6xf32>, vector<8x3xf32> -> vector<8x3xf32>
    %c1_40 = arith.constant 1 : index
    %c0_41 = arith.constant 0 : index
    %c0_42 = arith.constant 0 : index
    %45 = vector.load %arg7[%c1_40, %c0_41, %c0_42] : memref<2x3x6xf32, #tpu.memory_space<vmem>>, vector<1x3x6xf32>
    %46 = vector.shape_cast %45 : vector<1x3x6xf32> to vector<3x6xf32>
    %cst_43 = arith.constant dense<0.000000e+00> : vector<8x3xf32>
    %47 = tpu.matmul %5, %46, %cst_43 {dimension_numbers = #tpu.dot_dimension_numbers<[1], [1], [0], [0], [0, 0, 1, 0], [], []>} : vector<8x6xf32>, vector<3x6xf32>, vector<8x3xf32> -> vector<8x3xf32>
    %cst_44 = arith.constant dense<0.000000e+00> : vector<8x8xf32>
    %48 = tpu.matmul %41, %44, %cst_44 {dimension_numbers = #tpu.dot_dimension_numbers<[1], [1], [0], [0], [0, 0, 1, 0], [], []>} : vector<8x3xf32>, vector<8x3xf32>, vector<8x8xf32> -> vector<8x8xf32>
    %cst_45 = arith.constant -1.000000e+09 : f32
    %49 = vector.broadcast %cst_45 : f32 to vector<8x8xf32>
    %50 = arith.select %9, %49, %48 : vector<8x8xi1>, vector<8x8xf32>
    %cst_46 = arith.constant dense<0xFF800000> : vector<8xf32>
    %51 = vector.multi_reduction <maximumf>, %50, %cst_46 [1] : vector<8x8xf32> to vector<8xf32>
    %52 = vector.shape_cast %51 : vector<8xf32> to vector<8x1xf32>
    %53 = vector.broadcast %52 : vector<8x1xf32> to vector<8x8xf32>
    %54 = arith.subf %50, %53 : vector<8x8xf32>
    %55 = math.exp %54 : vector<8x8xf32>
    %cst_47 = arith.constant dense<0.000000e+00> : vector<8xf32>
    %56 = vector.multi_reduction <add>, %55, %cst_47 [1] : vector<8x8xf32> to vector<8xf32>
    %57 = vector.shape_cast %56 : vector<8xf32> to vector<8x1xf32>
    %cst_48 = arith.constant dense<0.000000e+00> : vector<8x3xf32>
    %58 = tpu.matmul %55, %47, %cst_48 {dimension_numbers = #tpu.dot_dimension_numbers<[1], [0], [0], [1], [0, 0, 1, 1], [], []>} : vector<8x8xf32>, vector<8x3xf32>, vector<8x3xf32> -> vector<8x3xf32>
    %59 = vector.broadcast %57 : vector<8x1xf32> to vector<8x3xf32>
    %60 = arith.divf %58, %59 : vector<8x3xf32>
    %c1_49 = arith.constant 1 : index
    %c0_50 = arith.constant 0 : index
    %c0_51 = arith.constant 0 : index
    %61 = vector.load %arg8[%c1_49, %c0_50, %c0_51] : memref<2x6x3xf32, #tpu.memory_space<vmem>>, vector<1x6x3xf32>
    %62 = vector.shape_cast %61 : vector<1x6x3xf32> to vector<6x3xf32>
    %cst_52 = arith.constant dense<0.000000e+00> : vector<8x6xf32>
    %63 = tpu.matmul %60, %62, %cst_52 {dimension_numbers = #tpu.dot_dimension_numbers<[1], [1], [0], [0], [0, 0, 1, 0], [], []>} : vector<8x3xf32>, vector<6x3xf32>, vector<8x6xf32> -> vector<8x6xf32>
    %64 = arith.addf %36, %63 : vector<8x6xf32>
    %65 = arith.addf %1, %64 : vector<8x6xf32>
    %cst_53 = arith.constant dense<0.000000e+00> : vector<8xf32>
    %66 = vector.multi_reduction <add>, %65, %cst_53 [1] : vector<8x6xf32> to vector<8xf32>
    %67 = vector.shape_cast %66 : vector<8xf32> to vector<8x1xf32>
    %cst_54 = arith.constant 6.000000e+00 : f32
    %68 = vector.broadcast %cst_54 : f32 to vector<8x1xf32>
    %69 = arith.divf %67, %68 : vector<8x1xf32>
    %70 = vector.broadcast %69 : vector<8x1xf32> to vector<8x6xf32>
    %71 = arith.subf %65, %70 : vector<8x6xf32>
    %72 = arith.mulf %71, %71 : vector<8x6xf32>
    %cst_55 = arith.constant dense<0.000000e+00> : vector<8xf32>
    %73 = vector.multi_reduction <add>, %72, %cst_55 [1] : vector<8x6xf32> to vector<8xf32>
    %74 = vector.shape_cast %73 : vector<8xf32> to vector<8x1xf32>
    %cst_56 = arith.constant 6.000000e+00 : f32
    %75 = vector.broadcast %cst_56 : f32 to vector<8x1xf32>
    %76 = arith.divf %74, %75 : vector<8x1xf32>
    %cst_57 = arith.constant 9.99999974E-6 : f32
    %77 = vector.broadcast %cst_57 : f32 to vector<8x1xf32>
    %78 = arith.addf %76, %77 : vector<8x1xf32>
    %79 = math.rsqrt %78 : vector<8x1xf32>
    %80 = vector.broadcast %79 : vector<8x1xf32> to vector<8x6xf32>
    %81 = arith.mulf %71, %80 : vector<8x6xf32>
    %c0_58 = arith.constant 0 : index
    %c0_59 = arith.constant 0 : index
    %82 = vector.load %arg9[%c0_58, %c0_59] : memref<1x6xf32, #tpu.memory_space<vmem>>, vector<1x6xf32>
    %83 = vector.broadcast %82 : vector<1x6xf32> to vector<8x6xf32>
    %84 = arith.mulf %81, %83 : vector<8x6xf32>
    %c0_60 = arith.constant 0 : index
    %c0_61 = arith.constant 0 : index
    %85 = vector.load %arg10[%c0_60, %c0_61] : memref<1x6xf32, #tpu.memory_space<vmem>>, vector<1x6xf32>
    %86 = vector.broadcast %85 : vector<1x6xf32> to vector<8x6xf32>
    %87 = arith.addf %84, %86 : vector<8x6xf32>
    %c0_62 = arith.constant 0 : index
    %c0_63 = arith.constant 0 : index
    %c0_64 = arith.constant 0 : index
    %88 = vector.load %arg11[%c0_62, %c0_63, %c0_64] : memref<1x8x6xf32, #tpu.memory_space<vmem>>, vector<1x8x6xf32>
    %89 = vector.shape_cast %88 : vector<1x8x6xf32> to vector<8x6xf32>
    %90 = vector.shape_cast %87 : vector<8x6xf32> to vector<1x8x6xf32>
    tpu.vector_store %arg11[%c0_62, %c0_63, %c0_64], %90 {strides = array<i32>} : memref<1x8x6xf32, #tpu.memory_space<vmem>>, vector<1x8x6xf32>,
    return
  }
  func.func @transform_0(%arg0: i32) -> (i32, i32, i32) {
    %c0_i32 = arith.constant 0 : i32
    %c0_i32_0 = arith.constant 0 : i32
    %c0_i32_1 = arith.constant 0 : i32
    return %arg0, %c0_i32, %c0_i32_0 : i32, i32, i32
  }
  func.func @transform_1(%arg0: i32) -> (i32, i32, i32) {
    %c0_i32 = arith.constant 0 : i32
    %c0_i32_0 = arith.constant 0 : i32
    %c0_i32_1 = arith.constant 0 : i32
    return %arg0, %c0_i32, %c0_i32_0 : i32, i32, i32
  }
  func.func @transform_2(%arg0: i32) -> (i32, i32, i32) {
    %c0_i32 = arith.constant 0 : i32
    %c0_i32_0 = arith.constant 0 : i32
    %c0_i32_1 = arith.constant 0 : i32
    return %arg0, %c0_i32, %c0_i32_0 : i32, i32, i32
  }
  func.func @transform_3(%arg0: i32) -> (i32, i32, i32) {
    %c0_i32 = arith.constant 0 : i32
    %c0_i32_0 = arith.constant 0 : i32
    %c0_i32_1 = arith.constant 0 : i32
    return %arg0, %c0_i32, %c0_i32_0 : i32, i32, i32
  }
  func.func @transform_4(%arg0: i32) -> (i32, i32, i32) {
    %c0_i32 = arith.constant 0 : i32
    %c0_i32_0 = arith.constant 0 : i32
    %c0_i32_1 = arith.constant 0 : i32
    %c0_i32_2 = arith.constant 0 : i32
    return %c0_i32, %c0_i32_0, %c0_i32_1 : i32, i32, i32
  }
  func.func @transform_5(%arg0: i32) -> (i32, i32, i32) {
    %c0_i32 = arith.constant 0 : i32
    %c0_i32_0 = arith.constant 0 : i32
    %c0_i32_1 = arith.constant 0 : i32
    %c0_i32_2 = arith.constant 0 : i32
    return %c0_i32, %c0_i32_0, %c0_i32_1 : i32, i32, i32
  }
  func.func @transform_6(%arg0: i32) -> (i32, i32, i32) {
    %c0_i32 = arith.constant 0 : i32
    %c0_i32_0 = arith.constant 0 : i32
    %c0_i32_1 = arith.constant 0 : i32
    %c0_i32_2 = arith.constant 0 : i32
    return %c0_i32, %c0_i32_0, %c0_i32_1 : i32, i32, i32
  }
  func.func @transform_7(%arg0: i32) -> (i32, i32, i32) {
    %c0_i32 = arith.constant 0 : i32
    %c0_i32_0 = arith.constant 0 : i32
    %c0_i32_1 = arith.constant 0 : i32
    %c0_i32_2 = arith.constant 0 : i32
    return %c0_i32, %c0_i32_0, %c0_i32_1 : i32, i32, i32
  }
  func.func @transform_8(%arg0: i32) -> (i32, i32) {
    %c0_i32 = arith.constant 0 : i32
    %c0_i32_0 = arith.constant 0 : i32
    %c0_i32_1 = arith.constant 0 : i32
    return %c0_i32, %c0_i32_0 : i32, i32
  }
  func.func @transform_9(%arg0: i32) -> (i32, i32) {
    %c0_i32 = arith.constant 0 : i32
    %c0_i32_0 = arith.constant 0 : i32
    %c0_i32_1 = arith.constant 0 : i32
    return %c0_i32, %c0_i32_0 : i32, i32
  }
  func.func @transform_10(%arg0: i32) -> (i32, i32, i32) {
    %c0_i32 = arith.constant 0 : i32
    %c0_i32_0 = arith.constant 0 : i32
    %c0_i32_1 = arith.constant 0 : i32
    return %arg0, %c0_i32, %c0_i32_0 : i32, i32, i32
  }
}

</mosaic_0001>

<llo_original>
// kernel: tpu_custom_call.1
$region0: #{tpu_custom_call.1}
  #allocation0 [shape = 'u32[]', space=smem, size = 0x4, offset = 0x4, fixed_abs, tag = 'smem constant byte address 0x4 - core index']
  #allocation1 [shape = 'u32[144,128]{1,0:T(1,128)}', space=vmem, size = 0x12000, scoped, tag = 'internal scratch']
  %s0 = inlined_call_operand.vmem [shape: f32[2,8,6], index: 0, kind: input, shape index: {}]
  %s1 = inlined_call_operand.vmem [shape: f32[2,8,6], index: 1, kind: input, shape index: {}]
  %s2 = inlined_call_operand.vmem [shape: f32[2,8,6], index: 2, kind: input, shape index: {}]
  %s3 = inlined_call_operand.vmem [shape: s32[2,8,8], index: 3, kind: input, shape index: {}]
  %s4 = inlined_call_operand.vmem [shape: f32[2,3,6], index: 4, kind: input, shape index: {}]
  %s5 = inlined_call_operand.vmem [shape: f32[2,3,6], index: 5, kind: input, shape index: {}]
  %s6 = inlined_call_operand.vmem [shape: f32[2,3,6], index: 6, kind: input, shape index: {}]
  %s7 = inlined_call_operand.vmem [shape: f32[2,6,3], index: 7, kind: input, shape index: {}]
  %s8 = inlined_call_operand.vmem [shape: f32[1,6], index: 8, kind: input, shape index: {}]
  %s9 = inlined_call_operand.vmem [shape: f32[1,6], index: 9, kind: input, shape index: {}]
  %s10 = inlined_call_operand.vmem [shape: f32[2,8,6], index: 10, kind: output, shape index: {}]
  %s11 = sld [smem:[#allocation0]]
  $region73: #{tpu_custom_call.1} parent=0
    _
  %s13 = ssub.s32 1, %s11
  %s14 = scalar_select 0, %s13, %s11
  loop: start=0, step=1, limit=4
  $region2: #{tpu_custom_call.1} parent=0 // loop_pre_header
    _
  $region3: #{tpu_custom_call.1} parent=0 // loop_header
    %s16 = sphi 0, %s20
    %p17 = scmp.ge.s32.totalorder %s16, 4
    %s26 = sphi 0, %s28
    %s29 = sphi 0, %s26
    %s30 = sphi 0, %s29
    %s46 = sphi 0, %s30
    %s52 = sphi 0, %s54
    %s55 = sphi 0, %s52
    %s56 = sphi 0, %s55
    %s72 = sphi 0, %s56
    %s78 = sphi 0, %s80
    %s81 = sphi 0, %s78
    %s82 = sphi 0, %s81
    %s98 = sphi 0, %s82
    %s104 = sphi 0, %s106
    %s107 = sphi 0, %s104
    %s108 = sphi 0, %s107
    %s124 = sphi 0, %s108
    %s128 = sphi 0, %s128
    %s130 = sphi 0, %s128
    %s131 = sphi 0, %s130
    %s145 = sphi 0, %s131
    %s149 = sphi 0, %s149
    %s151 = sphi 0, %s149
    %s152 = sphi 0, %s151
    %s166 = sphi 0, %s152
    %s170 = sphi 0, %s170
    %s172 = sphi 0, %s170
    %s173 = sphi 0, %s172
    %s187 = sphi 0, %s173
    %s191 = sphi 0, %s191
    %s193 = sphi 0, %s191
    %s194 = sphi 0, %s193
    %s208 = sphi 0, %s194
    %s212 = sphi 0, %s212
    %s214 = sphi 0, %s212
    %s215 = sphi 0, %s214
    %s229 = sphi 0, %s215
    %s233 = sphi 0, %s233
    %s235 = sphi 0, %s233
    %s236 = sphi 0, %s235
    %s250 = sphi 0, %s236
    %s256 = sphi 0, %s258
    %s259 = sphi 0, %s256
    %s260 = sphi 0, %s259
    %s276 = sphi 0, %s260
  $region4: #{tpu_custom_call.1} parent=0 // loop_header_branch
    %19 = sbr.rel (%p17) target = $region8
  $region5: #{tpu_custom_call.1} parent=0 // loop_body
    %s21 = ssub.s32 %s16, 1
    %s22 = ssub.s32 %s16, 2
    %s23 = sadd.s32 %s16, 1
    %s24 = ssub.s32 %s16, %s23
    %p25 = scmp.eq.s32.totalorder %s24, 0
    %s27 = sadd.s32 %s26, 1
    %s28 = scalar_select %p25, %s26, %s27
    %p31 = pneg %p25
    %p32 = scmp.eq.s32.totalorder %s16, 1
    %p33 = por %p31, %p32
    %p34 = scmp.ne.s32.totalorder %s26, %s29
    %p35 = scmp.eq.s32.totalorder %s16, 0
    %p36 = por %p34, %p35
    %p37 = scmp.ne.s32.totalorder %s26, %s29
    %p38 = scmp.eq.s32.totalorder %s21, 1
    %p39 = por %p37, %p38
    %p40 = scmp.ne.s32.totalorder %s29, %s30
    %p41 = scmp.eq.s32.totalorder %s21, 0
    %p42 = por %p40, %p41
    %p43 = scmp.ne.s32.totalorder %s29, %s30
    %p44 = scmp.eq.s32.totalorder %s22, 1
    %p45 = por %p43, %p44
    %p47 = scmp.ne.s32.totalorder %s30, %s46
    %p48 = scmp.eq.s32.totalorder %s22, 0
    %p49 = por %p47, %p48
    %s50 = ssub.s32 %s16, %s23
    %p51 = scmp.eq.s32.totalorder %s50, 0
    %s53 = sadd.s32 %s52, 1
    %s54 = scalar_select %p51, %s52, %s53
    %p57 = pneg %p51
    %p58 = scmp.eq.s32.totalorder %s16, 1
    %p59 = por %p57, %p58
    %p60 = scmp.ne.s32.totalorder %s52, %s55
    %p61 = scmp.eq.s32.totalorder %s16, 0
    %p62 = por %p60, %p61
    %p63 = scmp.ne.s32.totalorder %s52, %s55
    %p64 = scmp.eq.s32.totalorder %s21, 1
    %p65 = por %p63, %p64
    %p66 = scmp.ne.s32.totalorder %s55, %s56
    %p67 = scmp.eq.s32.totalorder %s21, 0
    %p68 = por %p66, %p67
    %p69 = scmp.ne.s32.totalorder %s55, %s56
    %p70 = scmp.eq.s32.totalorder %s22, 1
    %p71 = por %p69, %p70
    %p73 = scmp.ne.s32.totalorder %s56, %s72
    %p74 = scmp.eq.s32.totalorder %s22, 0
    %p75 = por %p73, %p74
    %s76 = ssub.s32 %s16, %s23
    %p77 = scmp.eq.s32.totalorder %s76, 0
    %s79 = sadd.s32 %s78, 1
    %s80 = scalar_select %p77, %s78, %s79
    %p83 = pneg %p77
    %p84 = scmp.eq.s32.totalorder %s16, 1
    %p85 = por %p83, %p84
    %p86 = scmp.ne.s32.totalorder %s78, %s81
    %p87 = scmp.eq.s32.totalorder %s16, 0
    %p88 = por %p86, %p87
    %p89 = scmp.ne.s32.totalorder %s78, %s81
    %p90 = scmp.eq.s32.totalorder %s21, 1
    %p91 = por %p89, %p90
    %p92 = scmp.ne.s32.totalorder %s81, %s82
    %p93 = scmp.eq.s32.totalorder %s21, 0
    %p94 = por %p92, %p93
    %p95 = scmp.ne.s32.totalorder %s81, %s82
    %p96 = scmp.eq.s32.totalorder %s22, 1
    %p97 = por %p95, %p96
    %p99 = scmp.ne.s32.totalorder %s82, %s98
    %p100 = scmp.eq.s32.totalorder %s22, 0
    %p101 = por %p99, %p100
    %s102 = ssub.s32 %s16, %s23
    %p103 = scmp.eq.s32.totalorder %s102, 0
    %s105 = sadd.s32 %s104, 1
    %s106 = scalar_select %p103, %s104, %s105
    %p109 = pneg %p103
    %p110 = scmp.eq.s32.totalorder %s16, 1
    %p111 = por %p109, %p110
    %p112 = scmp.ne.s32.totalorder %s104, %s107
    %p113 = scmp.eq.s32.totalorder %s16, 0
    %p114 = por %p112, %p113
    %p115 = scmp.ne.s32.totalorder %s104, %s107
    %p116 = scmp.eq.s32.totalorder %s21, 1
    %p117 = por %p115, %p116
    %p118 = scmp.ne.s32.totalorder %s107, %s108
    %p119 = scmp.eq.s32.totalorder %s21, 0
    %p120 = por %p118, %p119
    %p121 = scmp.ne.s32.totalorder %s107, %s108
    %p122 = scmp.eq.s32.totalorder %s22, 1
    %p123 = por %p121, %p122
    %p125 = scmp.ne.s32.totalorder %s108, %s124
    %p126 = scmp.eq.s32.totalorder %s22, 0
    %p127 = por %p125, %p126
    %s129 = sadd.s32 %s128, 1
    %p132 = scmp.eq.s32.totalorder %s16, 1
    %p133 = scmp.ne.s32.totalorder %s128, %s130
    %p134 = scmp.eq.s32.totalorder %s16, 0
    %p135 = por %p133, %p134
    %p136 = scmp.ne.s32.totalorder %s128, %s130
    %p137 = scmp.eq.s32.totalorder %s21, 1
    %p138 = por %p136, %p137
    %p139 = scmp.ne.s32.totalorder %s130, %s131
    %p140 = scmp.eq.s32.totalorder %s21, 0
    %p141 = por %p139, %p140
    %p142 = scmp.ne.s32.totalorder %s130, %s131
    %p143 = scmp.eq.s32.totalorder %s22, 1
    %p144 = por %p142, %p143
    %p146 = scmp.ne.s32.totalorder %s131, %s145
    %p147 = scmp.eq.s32.totalorder %s22, 0
    %p148 = por %p146, %p147
    %s150 = sadd.s32 %s149, 1
    %p153 = scmp.eq.s32.totalorder %s16, 1
    %p154 = scmp.ne.s32.totalorder %s149, %s151
    %p155 = scmp.eq.s32.totalorder %s16, 0
    %p156 = por %p154, %p155
    %p157 = scmp.ne.s32.totalorder %s149, %s151
    %p158 = scmp.eq.s32.totalorder %s21, 1
    %p159 = por %p157, %p158
    %p160 = scmp.ne.s32.totalorder %s151, %s152
    %p161 = scmp.eq.s32.totalorder %s21, 0
    %p162 = por %p160, %p161
    %p163 = scmp.ne.s32.totalorder %s151, %s152
    %p164 = scmp.eq.s32.totalorder %s22, 1
    %p165 = por %p163, %p164
    %p167 = scmp.ne.s32.totalorder %s152, %s166
    %p168 = scmp.eq.s32.totalorder %s22, 0
    %p169 = por %p167, %p168
    %s171 = sadd.s32 %s170, 1
    %p174 = scmp.eq.s32.totalorder %s16, 1
    %p175 = scmp.ne.s32.totalorder %s170, %s172
    %p176 = scmp.eq.s32.totalorder %s16, 0
    %p177 = por %p175, %p176
    %p178 = scmp.ne.s32.totalorder %s170, %s172
    %p179 = scmp.eq.s32.totalorder %s21, 1
    %p180 = por %p178, %p179
    %p181 = scmp.ne.s32.totalorder %s172, %s173
    %p182 = scmp.eq.s32.totalorder %s21, 0
    %p183 = por %p181, %p182
    %p184 = scmp.ne.s32.totalorder %s172, %s173
    %p185 = scmp.eq.s32.totalorder %s22, 1
    %p186 = por %p184, %p185
    %p188 = scmp.ne.s32.totalorder %s173, %s187
    %p189 = scmp.eq.s32.totalorder %s22, 0
    %p190 = por %p188, %p189
    %s192 = sadd.s32 %s191, 1
    %p195 = scmp.eq.s32.totalorder %s16, 1
    %p196 = scmp.ne.s32.totalorder %s191, %s193
    %p197 = scmp.eq.s32.totalorder %s16, 0
    %p198 = por %p196, %p197
    %p199 = scmp.ne.s32.totalorder %s191, %s193
    %p200 = scmp.eq.s32.totalorder %s21, 1
    %p201 = por %p199, %p200
    %p202 = scmp.ne.s32.totalorder %s193, %s194
    %p203 = scmp.eq.s32.totalorder %s21, 0
    %p204 = por %p202, %p203
    %p205 = scmp.ne.s32.totalorder %s193, %s194
    %p206 = scmp.eq.s32.totalorder %s22, 1
    %p207 = por %p205, %p206
    %p209 = scmp.ne.s32.totalorder %s194, %s208
    %p210 = scmp.eq.s32.totalorder %s22, 0
    %p211 = por %p209, %p210
    %s213 = sadd.s32 %s212, 1
    %p216 = scmp.eq.s32.totalorder %s16, 1
    %p217 = scmp.ne.s32.totalorder %s212, %s214
    %p218 = scmp.eq.s32.totalorder %s16, 0
    %p219 = por %p217, %p218
    %p220 = scmp.ne.s32.totalorder %s212, %s214
    %p221 = scmp.eq.s32.totalorder %s21, 1
    %p222 = por %p220, %p221
    %p223 = scmp.ne.s32.totalorder %s214, %s215
    %p224 = scmp.eq.s32.totalorder %s21, 0
    %p225 = por %p223, %p224
    %p226 = scmp.ne.s32.totalorder %s214, %s215
    %p227 = scmp.eq.s32.totalorder %s22, 1
    %p228 = por %p226, %p227
    %p230 = scmp.ne.s32.totalorder %s215, %s229
    %p231 = scmp.eq.s32.totalorder %s22, 0
    %p232 = por %p230, %p231
    %s234 = sadd.s32 %s233, 1
    %p237 = scmp.eq.s32.totalorder %s16, 1
    %p238 = scmp.ne.s32.totalorder %s233, %s235
    %p239 = scmp.eq.s32.totalorder %s16, 0
    %p240 = por %p238, %p239
    %p241 = scmp.ne.s32.totalorder %s233, %s235
    %p242 = scmp.eq.s32.totalorder %s21, 1
    %p243 = por %p241, %p242
    %p244 = scmp.ne.s32.totalorder %s235, %s236
    %p245 = scmp.eq.s32.totalorder %s21, 0
    %p246 = por %p244, %p245
    %p247 = scmp.ne.s32.totalorder %s235, %s236
    %p248 = scmp.eq.s32.totalorder %s22, 1
    %p249 = por %p247, %p248
    %p251 = scmp.ne.s32.totalorder %s236, %s250
    %p252 = scmp.eq.s32.totalorder %s22, 0
    %p253 = por %p251, %p252
    %s254 = ssub.s32 %s16, %s23
    %p255 = scmp.eq.s32.totalorder %s254, 0
    %s257 = sadd.s32 %s256, 1
    %s258 = scalar_select %p255, %s256, %s257
    %p261 = pneg %p255
    %p262 = scmp.eq.s32.totalorder %s16, 1
    %p263 = por %p261, %p262
    %p264 = scmp.ne.s32.totalorder %s256, %s259
    %p265 = scmp.eq.s32.totalorder %s16, 0
    %p266 = por %p264, %p265
    %p267 = scmp.ne.s32.totalorder %s256, %s259
    %p268 = scmp.eq.s32.totalorder %s21, 1
    %p269 = por %p267, %p268
    %p270 = scmp.ne.s32.totalorder %s259, %s260
    %p271 = scmp.eq.s32.totalorder %s21, 0
    %p272 = por %p270, %p271
    %p273 = scmp.ne.s32.totalorder %s259, %s260
    %p274 = scmp.eq.s32.totalorder %s22, 1
    %p275 = por %p273, %p274
    %p277 = scmp.ne.s32.totalorder %s260, %s276
    %p278 = scmp.eq.s32.totalorder %s22, 0
    %p279 = por %p277, %p278
    %p280 = scmp.le.s32.totalorder 1, %s16
    %p281 = scmp.lt.s32.totalorder %s16, 3
    %p282 = pnand %p280, %p281
    %p283 = pneg %p282
    // Predicated region
    $region9: #{tpu_custom_call.1} parent=5 // pred_check
      _
    $region10: #{tpu_custom_call.1} parent=5 // pred_check_branch
      %285 = sbr.rel (%p282) target = $region12
    $region11: #{tpu_custom_call.1} parent=5 // pred_region
      %s286 = ssub.s32 %s16, 1
      // Predicated region
      $region13: #{tpu_custom_call.1} parent=11 // pred_check
        %p287 = pneg %p141
      $region14: #{tpu_custom_call.1} parent=11 // pred_check_branch
        %289 = sbr.rel (%p287) target = $region16
      $region15: #{tpu_custom_call.1} parent=11 // pred_region
        _
      $region16: #{tpu_custom_call.1} parent=11 // pred_fallthru
        _
      // Predicated region
      $region17: #{tpu_custom_call.1} parent=11 // pred_check
        %p290 = pneg %p162
      $region18: #{tpu_custom_call.1} parent=11 // pred_check_branch
        %292 = sbr.rel (%p290) target = $region20
      $region19: #{tpu_custom_call.1} parent=11 // pred_region
        _
      $region20: #{tpu_custom_call.1} parent=11 // pred_fallthru
        _
      // Predicated region
      $region21: #{tpu_custom_call.1} parent=11 // pred_check
        %p293 = pneg %p183
      $region22: #{tpu_custom_call.1} parent=11 // pred_check_branch
        %295 = sbr.rel (%p293) target = $region24
      $region23: #{tpu_custom_call.1} parent=11 // pred_region
        _
      $region24: #{tpu_custom_call.1} parent=11 // pred_fallthru
        _
      // Predicated region
      $region25: #{tpu_custom_call.1} parent=11 // pred_check
        %p296 = pneg %p204
      $region26: #{tpu_custom_call.1} parent=11 // pred_check_branch
        %298 = sbr.rel (%p296) target = $region28
      $region27: #{tpu_custom_call.1} parent=11 // pred_region
        _
      $region28: #{tpu_custom_call.1} parent=11 // pred_fallthru
        _
      // Predicated region
      $region29: #{tpu_custom_call.1} parent=11 // pred_check
        %p299 = pneg %p225
      $region30: #{tpu_custom_call.1} parent=11 // pred_check_branch
        %301 = sbr.rel (%p299) target = $region32
      $region31: #{tpu_custom_call.1} parent=11 // pred_region
        _
      $region32: #{tpu_custom_call.1} parent=11 // pred_fallthru
        _
      // Predicated region
      $region33: #{tpu_custom_call.1} parent=11 // pred_check
        %p302 = pneg %p246
      $region34: #{tpu_custom_call.1} parent=11 // pred_check_branch
        %304 = sbr.rel (%p302) target = $region36
      $region35: #{tpu_custom_call.1} parent=11 // pred_region
        _
      $region36: #{tpu_custom_call.1} parent=11 // pred_fallthru
        _
    $region12: #{tpu_custom_call.1} parent=5 // pred_fallthru
      _
    %p305 = scmp.lt.s32.totalorder %s16, 2
    // Predicated region
    $region37: #{tpu_custom_call.1} parent=5 // pred_check
      %p306 = pneg %p305
    $region38: #{tpu_custom_call.1} parent=5 // pred_check_branch
      %308 = sbr.rel (%p306) target = $region40
    $region39: #{tpu_custom_call.1} parent=5 // pred_region
      // Predicated region
      $region41: #{tpu_custom_call.1} parent=39 // pred_check
        %p309 = pneg %p36
      $region42: #{tpu_custom_call.1} parent=39 // pred_check_branch
        %311 = sbr.rel (%p309) target = $region44
      $region43: #{tpu_custom_call.1} parent=39 // pred_region
        %p312 = scmp.lt.s32.totalorder %s16, 1
        %s313 = scalar_select %p312, %s16, 1
        %s314 = smul.addr %s313, 8
        %s315 = scalar_lea.vmem %s0, %s314
      $region44: #{tpu_custom_call.1} parent=39 // pred_fallthru
        _
      // Predicated region
      $region45: #{tpu_custom_call.1} parent=39 // pred_check
        %p316 = pneg %p62
      $region46: #{tpu_custom_call.1} parent=39 // pred_check_branch
        %318 = sbr.rel (%p316) target = $region48
      $region47: #{tpu_custom_call.1} parent=39 // pred_region
        %p319 = scmp.lt.s32.totalorder %s16, 1
        %s320 = scalar_select %p319, %s16, 1
        %s321 = smul.addr %s320, 8
        %s322 = scalar_lea.vmem %s1, %s321
      $region48: #{tpu_custom_call.1} parent=39 // pred_fallthru
        _
      // Predicated region
      $region49: #{tpu_custom_call.1} parent=39 // pred_check
        %p323 = pneg %p88
      $region50: #{tpu_custom_call.1} parent=39 // pred_check_branch
        %325 = sbr.rel (%p323) target = $region52
      $region51: #{tpu_custom_call.1} parent=39 // pred_region
        %p326 = scmp.lt.s32.totalorder %s16, 1
        %s327 = scalar_select %p326, %s16, 1
        %s328 = smul.addr %s327, 8
        %s329 = scalar_lea.vmem %s2, %s328
      $region52: #{tpu_custom_call.1} parent=39 // pred_fallthru
        _
      // Predicated region
      $region53: #{tpu_custom_call.1} parent=39 // pred_check
        %p330 = pneg %p114
      $region54: #{tpu_custom_call.1} parent=39 // pred_check_branch
        %332 = sbr.rel (%p330) target = $region56
      $region55: #{tpu_custom_call.1} parent=39 // pred_region
        %p333 = scmp.lt.s32.totalorder %s16, 1
        %s334 = scalar_select %p333, %s16, 1
        %s335 = smul.addr %s334, 8
        %s336 = scalar_lea.vmem %s3, %s335
      $region56: #{tpu_custom_call.1} parent=39 // pred_fallthru
        _
    $region40: #{tpu_custom_call.1} parent=5 // pred_fallthru
      _
    %p337 = scmp.le.s32.totalorder 1, %s16
    %p338 = scmp.lt.s32.totalorder %s16, 3
    %p339 = pnand %p337, %p338
    %p340 = pneg %p339
    // Predicated region
    $region57: #{tpu_custom_call.1} parent=5 // pred_check
      _
    $region58: #{tpu_custom_call.1} parent=5 // pred_check_branch
      %342 = sbr.rel (%p339) target = $region60
    $region59: #{tpu_custom_call.1} parent=5 // pred_region
      %s343 = ssub.s32 %s16, 1
      %p344 = scmp.lt.s32.totalorder %s21, 1
      %s345 = scalar_select %p344, %s21, 1
      %s346 = smul.addr %s345, 8
      %s347 = scalar_lea.vmem %s0, %s346
      %p348 = pneg %p42
      %p349 = pneg %p39
      %p350 = scmp.lt.s32.totalorder %s21, 1
      %s351 = scalar_select %p350, %s21, 1
      %s352 = smul.addr %s351, 8
      %s353 = scalar_lea.vmem %s1, %s352
      %p354 = pneg %p68
      %p355 = pneg %p65
      %p356 = scmp.lt.s32.totalorder %s21, 1
      %s357 = scalar_select %p356, %s21, 1
      %s358 = smul.addr %s357, 8
      %s359 = scalar_lea.vmem %s2, %s358
      %p360 = pneg %p94
      %p361 = pneg %p91
      %p362 = scmp.lt.s32.totalorder %s21, 1
      %s363 = scalar_select %p362, %s21, 1
      %s364 = smul.addr %s363, 8
      %s365 = scalar_lea.vmem %s3, %s364
      %p366 = pneg %p120
      %p367 = pneg %p117
      %p368 = pneg %p141
      %p369 = pneg %p138
      %p370 = pneg %p162
      %p371 = pneg %p159
      %p372 = pneg %p183
      %p373 = pneg %p180
      %p374 = pneg %p204
      %p375 = pneg %p201
      %p376 = pneg %p225
      %p377 = pneg %p222
      %p378 = pneg %p246
      %p379 = pneg %p243
      %p380 = pneg %p272
      %p381 = pneg %p269
      %p382 = scmp.lt.s32.totalorder %s21, 1
      %s383 = scalar_select %p382, %s21, 1
      %s384 = smul.addr %s383, 8
      %s385 = scalar_lea.vmem %s10, %s384
      %p386 = scmp.lt.s32.totalorder %s21, 1
      %s387 = scalar_select %p386, %s21, 1
      %s388 = smul.addr %s387, 8
      %s389 = scalar_lea.vmem %s0, %s388
      %p390 = scmp.lt.s32.totalorder %s21, 1
      %s391 = scalar_select %p390, %s21, 1
      %s392 = smul.addr %s391, 8
      %s393 = scalar_lea.vmem %s1, %s392
      %p394 = scmp.lt.s32.totalorder %s21, 1
      %s395 = scalar_select %p394, %s21, 1
      %s396 = smul.addr %s395, 8
      %s397 = scalar_lea.vmem %s2, %s396
      %p398 = scmp.lt.s32.totalorder %s21, 1
      %s399 = scalar_select %p398, %s21, 1
      %s400 = smul.addr %s399, 8
      %s401 = scalar_lea.vmem %s3, %s400
      %p402 = scmp.lt.s32.totalorder %s21, 1
      %s403 = scalar_select %p402, %s21, 1
      %s404 = smul.addr %s403, 8
      %s405 = scalar_lea.vmem %s10, %s404
      %v406 = vld [vmem:[%s389] sm:$0xff]
      %v407 = vld [vmem:[%s393] sm:$0xff]
      %v408 = vld [vmem:[%s397] sm:$0xff]
      %v409 = vld [vmem:[%s401] sm:$0xff]
      %vm410 = vcmp.ne.s32.totalorder %v409, 0
      %v411 = vld [vmem:[%s4] sm:$0x7]
      %vm412 = vcmask 48128
      %v414 = vsel %vm412, %v406, 0
      %v417 = vsel %vm412, %v411, 0
      %419 = vmatprep.subr.mxu0 0.0
      %420 = vmatpush1.xpose.msra.mxu0 0.0
      %421 = vmatprep.subr.mxu0 0.0
      %422 = vmatpush1.xpose.msra.mxu0 0.0
      %423 = vmatprep.subr.mxu0 0.0
      %424 = vmatpush1.xpose.msra.mxu0 0.0
      %425 = vmatprep.subr.mxu0 0.0
      %426 = vmatpush1.xpose.msra.mxu0 0.0
      %427 = vmatprep.subr.mxu0 0.0
      %428 = vmatpush1.xpose.msra.mxu0 0.0
      %429 = vmatprep.subr.mxu0 0.0
      %430 = vmatpush1.xpose.msra.mxu0 0.0
      %431 = vmatprep.subr.mxu0 0.0
      %432 = vmatpush1.xpose.msra.mxu0 0.0
      %433 = vmatprep.subr.mxu0 0.0
      %434 = vmatpush1.xpose.msra.mxu0 0.0
      %435 = vmatprep.subr.mxu0 0.0
      %436 = vmatpush1.xpose.msra.mxu0 0.0
      %437 = vmatprep.subr.mxu0 0.0
      %438 = vmatpush1.xpose.msra.mxu0 0.0
      %439 = vmatprep.subr.mxu0 0.0
      %440 = vmatpush1.xpose.msra.mxu0 0.0
      %441 = vmatprep.subr.mxu0 0.0
      %442 = vmatpush1.xpose.msra.mxu0 0.0
      %443 = vmatprep.subr.mxu0 0.0
      %444 = vmatpush1.xpose.msra.mxu0 0.0
      %445 = vmatprep.subr.mxu0 0.0
      %446 = vmatpush1.xpose.msra.mxu0 0.0
      %447 = vmatprep.subr.mxu0 0.0
      %448 = vmatpush1.xpose.msra.mxu0 0.0
      %449 = vmatprep.subr.mxu0 0.0
      %450 = vmatpush1.xpose.msra.mxu0 %v417
      %451 = vmatprep.subr.mxu0 0.0
      %452 = vmatpush2.xpose.msra.mxu0 0.0
      %453 = vmatprep.subr.mxu0 0.0
      %454 = vmatpush2.xpose.msra.mxu0 0.0
      %455 = vmatprep.subr.mxu0 0.0
      %456 = vmatpush2.xpose.msra.mxu0 0.0
      %457 = vmatprep.subr.mxu0 0.0
      %458 = vmatpush2.xpose.msra.mxu0 0.0
      %459 = vmatprep.subr.mxu0 0.0
      %460 = vmatpush2.xpose.msra.mxu0 0.0
      %461 = vmatprep.subr.mxu0 0.0
      %462 = vmatpush2.xpose.msra.mxu0 0.0
      %463 = vmatprep.subr.mxu0 0.0
      %464 = vmatpush2.xpose.msra.mxu0 0.0
      %465 = vmatprep.subr.mxu0 0.0
      %466 = vmatpush2.xpose.msra.mxu0 0.0
      %467 = vmatprep.subr.mxu0 0.0
      %468 = vmatpush2.xpose.msra.mxu0 0.0
      %469 = vmatprep.subr.mxu0 0.0
      %470 = vmatpush2.xpose.msra.mxu0 0.0
      %471 = vmatprep.subr.mxu0 0.0
      %472 = vmatpush2.xpose.msra.mxu0 0.0
      %473 = vmatprep.subr.mxu0 0.0
      %474 = vmatpush2.xpose.msra.mxu0 0.0
      %475 = vmatprep.subr.mxu0 0.0
      %476 = vmatpush2.xpose.msra.mxu0 0.0
      %477 = vmatprep.subr.mxu0 0.0
      %478 = vmatpush2.xpose.msra.mxu0 0.0
      %479 = vmatprep.subr.mxu0 0.0
      %480 = vmatpush2.xpose.msra.mxu0 0.0
      %481 = vmatprep.subr.mxu0 0.0
      %482 = vmatpush2.xpose.msra.mxu0 0.0
      %483 = vmatprep.mubr.f32.mxu0 0.0
      %484 = vmatmul.mubr.f32.gmra.mxu0 %v414
      %v485 = vpop.f32.mrf.mxu0
      %v486 = vadd.f32 0.0, %v485
      %v487 = vpop.f32.mrf.mxu0
      %488 = vdwg.mxu0
      %v489 = vmul.f32 %v486, 0.57735026
      %v490 = vld [vmem:[%s5] sm:$0x7]
      %v492 = vsel %vm412, %v407, 0
      %v495 = vsel %vm412, %v490, 0
      %497 = vmatprep.subr.mxu0 0.0
      %498 = vmatpush1.xpose.msra.mxu0 0.0
      %499 = vmatprep.subr.mxu0 0.0
      %500 = vmatpush1.xpose.msra.mxu0 0.0
      %501 = vmatprep.subr.mxu0 0.0
      %502 = vmatpush1.xpose.msra.mxu0 0.0
      %503 = vmatprep.subr.mxu0 0.0
      %504 = vmatpush1.xpose.msra.mxu0 0.0
      %505 = vmatprep.subr.mxu0 0.0
      %506 = vmatpush1.xpose.msra.mxu0 0.0
      %507 = vmatprep.subr.mxu0 0.0
      %508 = vmatpush1.xpose.msra.mxu0 0.0
      %509 = vmatprep.subr.mxu0 0.0
      %510 = vmatpush1.xpose.msra.mxu0 0.0
      %511 = vmatprep.subr.mxu0 0.0
      %512 = vmatpush1.xpose.msra.mxu0 0.0
      %513 = vmatprep.subr.mxu0 0.0
      %514 = vmatpush1.xpose.msra.mxu0 0.0
      %515 = vmatprep.subr.mxu0 0.0
      %516 = vmatpush1.xpose.msra.mxu0 0.0
      %517 = vmatprep.subr.mxu0 0.0
      %518 = vmatpush1.xpose.msra.mxu0 0.0
      %519 = vmatprep.subr.mxu0 0.0
      %520 = vmatpush1.xpose.msra.mxu0 0.0
      %521 = vmatprep.subr.mxu0 0.0
      %522 = vmatpush1.xpose.msra.mxu0 0.0
      %523 = vmatprep.subr.mxu0 0.0
      %524 = vmatpush1.xpose.msra.mxu0 0.0
      %525 = vmatprep.subr.mxu0 0.0
      %526 = vmatpush1.xpose.msra.mxu0 0.0
      %527 = vmatprep.subr.mxu0 0.0
      %528 = vmatpush1.xpose.msra.mxu0 %v495
      %529 = vmatprep.subr.mxu0 0.0
      %530 = vmatpush2.xpose.msra.mxu0 0.0
      %531 = vmatprep.subr.mxu0 0.0
      %532 = vmatpush2.xpose.msra.mxu0 0.0
      %533 = vmatprep.subr.mxu0 0.0
      %534 = vmatpush2.xpose.msra.mxu0 0.0
      %535 = vmatprep.subr.mxu0 0.0
      %536 = vmatpush2.xpose.msra.mxu0 0.0
      %537 = vmatprep.subr.mxu0 0.0
      %538 = vmatpush2.xpose.msra.mxu0 0.0
      %539 = vmatprep.subr.mxu0 0.0
      %540 = vmatpush2.xpose.msra.mxu0 0.0
      %541 = vmatprep.subr.mxu0 0.0
      %542 = vmatpush2.xpose.msra.mxu0 0.0
      %543 = vmatprep.subr.mxu0 0.0
      %544 = vmatpush2.xpose.msra.mxu0 0.0
      %545 = vmatprep.subr.mxu0 0.0
      %546 = vmatpush2.xpose.msra.mxu0 0.0
      %547 = vmatprep.subr.mxu0 0.0
      %548 = vmatpush2.xpose.msra.mxu0 0.0
      %549 = vmatprep.subr.mxu0 0.0
      %550 = vmatpush2.xpose.msra.mxu0 0.0
      %551 = vmatprep.subr.mxu0 0.0
      %552 = vmatpush2.xpose.msra.mxu0 0.0
      %553 = vmatprep.subr.mxu0 0.0
      %554 = vmatpush2.xpose.msra.mxu0 0.0
      %555 = vmatprep.subr.mxu0 0.0
      %556 = vmatpush2.xpose.msra.mxu0 0.0
      %557 = vmatprep.subr.mxu0 0.0
      %558 = vmatpush2.xpose.msra.mxu0 0.0
      %559 = vmatprep.subr.mxu0 0.0
      %560 = vmatpush2.xpose.msra.mxu0 0.0
      %561 = vmatprep.mubr.f32.mxu0 0.0
      %562 = vmatmul.mubr.f32.gmra.mxu0 %v492
      %v563 = vpop.f32.mrf.mxu0
      %v564 = vadd.f32 0.0, %v563
      %v565 = vpop.f32.mrf.mxu0
      %566 = vdwg.mxu0
      %v567 = vld [vmem:[%s6] sm:$0x7]
      %v569 = vsel %vm412, %v408, 0
      %v572 = vsel %vm412, %v567, 0
      %574 = vmatprep.subr.mxu0 0.0
      %575 = vmatpush1.xpose.msra.mxu0 0.0
      %576 = vmatprep.subr.mxu0 0.0
      %577 = vmatpush1.xpose.msra.mxu0 0.0
      %578 = vmatprep.subr.mxu0 0.0
      %579 = vmatpush1.xpose.msra.mxu0 0.0
      %580 = vmatprep.subr.mxu0 0.0
      %581 = vmatpush1.xpose.msra.mxu0 0.0
      %582 = vmatprep.subr.mxu0 0.0
      %583 = vmatpush1.xpose.msra.mxu0 0.0
      %584 = vmatprep.subr.mxu0 0.0
      %585 = vmatpush1.xpose.msra.mxu0 0.0
      %586 = vmatprep.subr.mxu0 0.0
      %587 = vmatpush1.xpose.msra.mxu0 0.0
      %588 = vmatprep.subr.mxu0 0.0
      %589 = vmatpush1.xpose.msra.mxu0 0.0
      %590 = vmatprep.subr.mxu0 0.0
      %591 = vmatpush1.xpose.msra.mxu0 0.0
      %592 = vmatprep.subr.mxu0 0.0
      %593 = vmatpush1.xpose.msra.mxu0 0.0
      %594 = vmatprep.subr.mxu0 0.0
      %595 = vmatpush1.xpose.msra.mxu0 0.0
      %596 = vmatprep.subr.mxu0 0.0
      %597 = vmatpush1.xpose.msra.mxu0 0.0
      %598 = vmatprep.subr.mxu0 0.0
      %599 = vmatpush1.xpose.msra.mxu0 0.0
      %600 = vmatprep.subr.mxu0 0.0
      %601 = vmatpush1.xpose.msra.mxu0 0.0
      %602 = vmatprep.subr.mxu0 0.0
      %603 = vmatpush1.xpose.msra.mxu0 0.0
      %604 = vmatprep.subr.mxu0 0.0
      %605 = vmatpush1.xpose.msra.mxu0 %v572
      %606 = vmatprep.subr.mxu0 0.0
      %607 = vmatpush2.xpose.msra.mxu0 0.0
      %608 = vmatprep.subr.mxu0 0.0
      %609 = vmatpush2.xpose.msra.mxu0 0.0
      %610 = vmatprep.subr.mxu0 0.0
      %611 = vmatpush2.xpose.msra.mxu0 0.0
      %612 = vmatprep.subr.mxu0 0.0
      %613 = vmatpush2.xpose.msra.mxu0 0.0
      %614 = vmatprep.subr.mxu0 0.0
      %615 = vmatpush2.xpose.msra.mxu0 0.0
      %616 = vmatprep.subr.mxu0 0.0
      %617 = vmatpush2.xpose.msra.mxu0 0.0
      %618 = vmatprep.subr.mxu0 0.0
      %619 = vmatpush2.xpose.msra.mxu0 0.0
      %620 = vmatprep.subr.mxu0 0.0
      %621 = vmatpush2.xpose.msra.mxu0 0.0
      %622 = vmatprep.subr.mxu0 0.0
      %623 = vmatpush2.xpose.msra.mxu0 0.0
      %624 = vmatprep.subr.mxu0 0.0
      %625 = vmatpush2.xpose.msra.mxu0 0.0
      %626 = vmatprep.subr.mxu0 0.0
      %627 = vmatpush2.xpose.msra.mxu0 0.0
      %628 = vmatprep.subr.mxu0 0.0
      %629 = vmatpush2.xpose.msra.mxu0 0.0
      %630 = vmatprep.subr.mxu0 0.0
      %631 = vmatpush2.xpose.msra.mxu0 0.0
      %632 = vmatprep.subr.mxu0 0.0
      %633 = vmatpush2.xpose.msra.mxu0 0.0
      %634 = vmatprep.subr.mxu0 0.0
      %635 = vmatpush2.xpose.msra.mxu0 0.0
      %636 = vmatprep.subr.mxu0 0.0
      %637 = vmatpush2.xpose.msra.mxu0 0.0
      %638 = vmatprep.mubr.f32.mxu0 0.0
      %639 = vmatmul.mubr.f32.gmra.mxu0 %v569
      %v640 = vpop.f32.mrf.mxu0
      %v641 = vadd.f32 0.0, %v640
      %v642 = vpop.f32.mrf.mxu0
      %643 = vdwg.mxu0
      %vm644 = vcmask 23552
      %v646 = vsel %vm644, %v489, 0
      %v649 = vsel %vm644, %v564, 0
      %651 = vmatprep.subr.mxu0 0.0
      %652 = vmatpush1.xpose.msra.mxu0 0.0
      %653 = vmatprep.subr.mxu0 0.0
      %654 = vmatpush1.xpose.msra.mxu0 0.0
      %655 = vmatprep.subr.mxu0 0.0
      %656 = vmatpush1.xpose.msra.mxu0 0.0
      %657 = vmatprep.subr.mxu0 0.0
      %658 = vmatpush1.xpose.msra.mxu0 0.0
      %659 = vmatprep.subr.mxu0 0.0
      %660 = vmatpush1.xpose.msra.mxu0 0.0
      %661 = vmatprep.subr.mxu0 0.0
      %662 = vmatpush1.xpose.msra.mxu0 0.0
      %663 = vmatprep.subr.mxu0 0.0
      %664 = vmatpush1.xpose.msra.mxu0 0.0
      %665 = vmatprep.subr.mxu0 0.0
      %666 = vmatpush1.xpose.msra.mxu0 0.0
      %667 = vmatprep.subr.mxu0 0.0
      %668 = vmatpush1.xpose.msra.mxu0 0.0
      %669 = vmatprep.subr.mxu0 0.0
      %670 = vmatpush1.xpose.msra.mxu0 0.0
      %671 = vmatprep.subr.mxu0 0.0
      %672 = vmatpush1.xpose.msra.mxu0 0.0
      %673 = vmatprep.subr.mxu0 0.0
      %674 = vmatpush1.xpose.msra.mxu0 0.0
      %675 = vmatprep.subr.mxu0 0.0
      %676 = vmatpush1.xpose.msra.mxu0 0.0
      %677 = vmatprep.subr.mxu0 0.0
      %678 = vmatpush1.xpose.msra.mxu0 0.0
      %679 = vmatprep.subr.mxu0 0.0
      %680 = vmatpush1.xpose.msra.mxu0 0.0
      %681 = vmatprep.subr.mxu0 0.0
      %682 = vmatpush1.xpose.msra.mxu0 %v649
      %683 = vmatprep.subr.mxu0 0.0
      %684 = vmatpush2.xpose.msra.mxu0 0.0
      %685 = vmatprep.subr.mxu0 0.0
      %686 = vmatpush2.xpose.msra.mxu0 0.0
      %687 = vmatprep.subr.mxu0 0.0
      %688 = vmatpush2.xpose.msra.mxu0 0.0
      %689 = vmatprep.subr.mxu0 0.0
      %690 = vmatpush2.xpose.msra.mxu0 0.0
      %691 = vmatprep.subr.mxu0 0.0
      %692 = vmatpush2.xpose.msra.mxu0 0.0
      %693 = vmatprep.subr.mxu0 0.0
      %694 = vmatpush2.xpose.msra.mxu0 0.0
      %695 = vmatprep.subr.mxu0 0.0
      %696 = vmatpush2.xpose.msra.mxu0 0.0
      %697 = vmatprep.subr.mxu0 0.0
      %698 = vmatpush2.xpose.msra.mxu0 0.0
      %699 = vmatprep.subr.mxu0 0.0
      %700 = vmatpush2.xpose.msra.mxu0 0.0
      %701 = vmatprep.subr.mxu0 0.0
      %702 = vmatpush2.xpose.msra.mxu0 0.0
      %703 = vmatprep.subr.mxu0 0.0
      %704 = vmatpush2.xpose.msra.mxu0 0.0
      %705 = vmatprep.subr.mxu0 0.0
      %706 = vmatpush2.xpose.msra.mxu0 0.0
      %707 = vmatprep.subr.mxu0 0.0
      %708 = vmatpush2.xpose.msra.mxu0 0.0
      %709 = vmatprep.subr.mxu0 0.0
      %710 = vmatpush2.xpose.msra.mxu0 0.0
      %711 = vmatprep.subr.mxu0 0.0
      %712 = vmatpush2.xpose.msra.mxu0 0.0
      %713 = vmatprep.subr.mxu0 0.0
      %714 = vmatpush2.xpose.msra.mxu0 0.0
      %715 = vmatprep.mubr.f32.mxu0 0.0
      %716 = vmatmul.mubr.f32.gmra.mxu0 %v646
      %v717 = vpop.f32.mrf.mxu0
      %v718 = vadd.f32 0.0, %v717
      %v719 = vpop.f32.mrf.mxu0
      %720 = vdwg.mxu0
      %v721 = vsel %vm410, -1e+09, %v718
      %vm722 = vcmask 64512
      %v723 = vsel %vm722, %v721, -inf
      %724 = vmax.xlane.f32.xlu0 %v723
      %v725 = vpop.xlane.xlu0 %724
      %v726 = vsub.f32 %v721, %v725
      %v727 = vmul.f32 %v726, 1.442695
      %v728 = vpow.pop %v727
      %v729 = vsel %vm722, %v728, 0.0
      %730 = vadd.xlane.f32.xlu0 %v729
      %v731 = vpop.xlane.xlu0 %730
      %v733 = vsel %vm722, %v728, 0
      %735 = vmatprep.subr.mxu0 0.0
      %736 = vmatpush1.msra.mxu0 0.0
      %737 = vmatprep.subr.mxu0 0.0
      %738 = vmatpush1.msra.mxu0 0.0
      %739 = vmatprep.subr.mxu0 0.0
      %740 = vmatpush1.msra.mxu0 0.0
      %741 = vmatprep.subr.mxu0 0.0
      %742 = vmatpush1.msra.mxu0 0.0
      %743 = vmatprep.subr.mxu0 0.0
      %744 = vmatpush1.msra.mxu0 0.0
      %745 = vmatprep.subr.mxu0 0.0
      %746 = vmatpush1.msra.mxu0 0.0
      %747 = vmatprep.subr.mxu0 0.0
      %748 = vmatpush1.msra.mxu0 0.0
      %749 = vmatprep.subr.mxu0 0.0
      %750 = vmatpush1.msra.mxu0 0.0
      %751 = vmatprep.subr.mxu0 0.0
      %752 = vmatpush1.msra.mxu0 0.0
      %753 = vmatprep.subr.mxu0 0.0
      %754 = vmatpush1.msra.mxu0 0.0
      %755 = vmatprep.subr.mxu0 0.0
      %756 = vmatpush1.msra.mxu0 0.0
      %757 = vmatprep.subr.mxu0 0.0
      %758 = vmatpush1.msra.mxu0 0.0
      %759 = vmatprep.subr.mxu0 0.0
      %760 = vmatpush1.msra.mxu0 0.0
      %761 = vmatprep.subr.mxu0 0.0
      %762 = vmatpush1.msra.mxu0 0.0
      %763 = vmatprep.subr.mxu0 0.0
      %764 = vmatpush1.msra.mxu0 0.0
      %765 = vmatprep.subr.mxu0 0.0
      %766 = vmatpush1.msra.mxu0 %v641
      %767 = vmatprep.subr.mxu0 0.0
      %768 = vmatpush2.msra.mxu0 0.0
      %769 = vmatprep.subr.mxu0 0.0
      %770 = vmatpush2.msra.mxu0 0.0
      %771 = vmatprep.subr.mxu0 0.0
      %772 = vmatpush2.msra.mxu0 0.0
      %773 = vmatprep.subr.mxu0 0.0
      %774 = vmatpush2.msra.mxu0 0.0
      %775 = vmatprep.subr.mxu0 0.0
      %776 = vmatpush2.msra.mxu0 0.0
      %777 = vmatprep.subr.mxu0 0.0
      %778 = vmatpush2.msra.mxu0 0.0
      %779 = vmatprep.subr.mxu0 0.0
      %780 = vmatpush2.msra.mxu0 0.0
      %781 = vmatprep.subr.mxu0 0.0
      %782 = vmatpush2.msra.mxu0 0.0
      %783 = vmatprep.subr.mxu0 0.0
      %784 = vmatpush2.msra.mxu0 0.0
      %785 = vmatprep.subr.mxu0 0.0
      %786 = vmatpush2.msra.mxu0 0.0
      %787 = vmatprep.subr.mxu0 0.0
      %788 = vmatpush2.msra.mxu0 0.0
      %789 = vmatprep.subr.mxu0 0.0
      %790 = vmatpush2.msra.mxu0 0.0
      %791 = vmatprep.subr.mxu0 0.0
      %792 = vmatpush2.msra.mxu0 0.0
      %793 = vmatprep.subr.mxu0 0.0
      %794 = vmatpush2.msra.mxu0 0.0
      %795 = vmatprep.subr.mxu0 0.0
      %796 = vmatpush2.msra.mxu0 0.0
      %797 = vmatprep.subr.mxu0 0.0
      %798 = vmatpush2.msra.mxu0 0.0
      %799 = vmatprep.mubr.f32.mxu0 0.0
      %800 = vmatmul.mubr.f32.gmra.mxu0 %v733
      %v801 = vpop.f32.mrf.mxu0
      %v802 = vadd.f32 0.0, %v801
      %v803 = vpop.f32.mrf.mxu0
      %804 = vdwg.mxu0
      %v805 = vrcp.pop %v731
      %v806 = vmul.f32 %v802, %v805
      %v807 = vld [vmem:[%s7] sm:$0x3f]
      %s808 = scalar_lea.vmem %s4, 4
      %v809 = vld [vmem:[%s808] sm:$0x7]
      %v811 = vsel %vm412, %v809, 0
      %813 = vmatprep.subr.mxu0 0.0
      %814 = vmatpush1.xpose.msra.mxu0 0.0
      %815 = vmatprep.subr.mxu0 0.0
      %816 = vmatpush1.xpose.msra.mxu0 0.0
      %817 = vmatprep.subr.mxu0 0.0
      %818 = vmatpush1.xpose.msra.mxu0 0.0
      %819 = vmatprep.subr.mxu0 0.0
      %820 = vmatpush1.xpose.msra.mxu0 0.0
      %821 = vmatprep.subr.mxu0 0.0
      %822 = vmatpush1.xpose.msra.mxu0 0.0
      %823 = vmatprep.subr.mxu0 0.0
      %824 = vmatpush1.xpose.msra.mxu0 0.0
      %825 = vmatprep.subr.mxu0 0.0
      %826 = vmatpush1.xpose.msra.mxu0 0.0
      %827 = vmatprep.subr.mxu0 0.0
      %828 = vmatpush1.xpose.msra.mxu0 0.0
      %829 = vmatprep.subr.mxu0 0.0
      %830 = vmatpush1.xpose.msra.mxu0 0.0
      %831 = vmatprep.subr.mxu0 0.0
      %832 = vmatpush1.xpose.msra.mxu0 0.0
      %833 = vmatprep.subr.mxu0 0.0
      %834 = vmatpush1.xpose.msra.mxu0 0.0
      %835 = vmatprep.subr.mxu0 0.0
      %836 = vmatpush1.xpose.msra.mxu0 0.0
      %837 = vmatprep.subr.mxu0 0.0
      %838 = vmatpush1.xpose.msra.mxu0 0.0
      %839 = vmatprep.subr.mxu0 0.0
      %840 = vmatpush1.xpose.msra.mxu0 0.0
      %841 = vmatprep.subr.mxu0 0.0
      %842 = vmatpush1.xpose.msra.mxu0 0.0
      %843 = vmatprep.subr.mxu0 0.0
      %844 = vmatpush1.xpose.msra.mxu0 %v811
      %845 = vmatprep.subr.mxu0 0.0
      %846 = vmatpush2.xpose.msra.mxu0 0.0
      %847 = vmatprep.subr.mxu0 0.0
      %848 = vmatpush2.xpose.msra.mxu0 0.0
      %849 = vmatprep.subr.mxu0 0.0
      %850 = vmatpush2.xpose.msra.mxu0 0.0
      %851 = vmatprep.subr.mxu0 0.0
      %852 = vmatpush2.xpose.msra.mxu0 0.0
      %853 = vmatprep.subr.mxu0 0.0
      %854 = vmatpush2.xpose.msra.mxu0 0.0
      %855 = vmatprep.subr.mxu0 0.0
      %856 = vmatpush2.xpose.msra.mxu0 0.0
      %857 = vmatprep.subr.mxu0 0.0
      %858 = vmatpush2.xpose.msra.mxu0 0.0
      %859 = vmatprep.subr.mxu0 0.0
      %860 = vmatpush2.xpose.msra.mxu0 0.0
      %861 = vmatprep.subr.mxu0 0.0
      %862 = vmatpush2.xpose.msra.mxu0 0.0
      %863 = vmatprep.subr.mxu0 0.0
      %864 = vmatpush2.xpose.msra.mxu0 0.0
      %865 = vmatprep.subr.mxu0 0.0
      %866 = vmatpush2.xpose.msra.mxu0 0.0
      %867 = vmatprep.subr.mxu0 0.0
      %868 = vmatpush2.xpose.msra.mxu0 0.0
      %869 = vmatprep.subr.mxu0 0.0
      %870 = vmatpush2.xpose.msra.mxu0 0.0
      %871 = vmatprep.subr.mxu0 0.0
      %872 = vmatpush2.xpose.msra.mxu0 0.0
      %873 = vmatprep.subr.mxu0 0.0
      %874 = vmatpush2.xpose.msra.mxu0 0.0
      %875 = vmatprep.subr.mxu0 0.0
      %876 = vmatpush2.xpose.msra.mxu0 0.0
      %877 = vmatprep.mubr.f32.mxu0 0.0
      %878 = vmatmul.mubr.f32.gmra.mxu0 %v414
      %v879 = vpop.f32.mrf.mxu0
      %v880 = vadd.f32 0.0, %v879
      %v881 = vpop.f32.mrf.mxu0
      %882 = vdwg.mxu0
      %v883 = vmul.f32 %v880, 0.57735026
      %s884 = scalar_lea.vmem %s5, 4
      %v885 = vld [vmem:[%s884] sm:$0x7]
      %v887 = vsel %vm412, %v885, 0
      %889 = vmatprep.subr.mxu0 0.0
      %890 = vmatpush1.xpose.msra.mxu0 0.0
      %891 = vmatprep.subr.mxu0 0.0
      %892 = vmatpush1.xpose.msra.mxu0 0.0
      %893 = vmatprep.subr.mxu0 0.0
      %894 = vmatpush1.xpose.msra.mxu0 0.0
      %895 = vmatprep.subr.mxu0 0.0
      %896 = vmatpush1.xpose.msra.mxu0 0.0
      %897 = vmatprep.subr.mxu0 0.0
      %898 = vmatpush1.xpose.msra.mxu0 0.0
      %899 = vmatprep.subr.mxu0 0.0
      %900 = vmatpush1.xpose.msra.mxu0 0.0
      %901 = vmatprep.subr.mxu0 0.0
      %902 = vmatpush1.xpose.msra.mxu0 0.0
      %903 = vmatprep.subr.mxu0 0.0
      %904 = vmatpush1.xpose.msra.mxu0 0.0
      %905 = vmatprep.subr.mxu0 0.0
      %906 = vmatpush1.xpose.msra.mxu0 0.0
      %907 = vmatprep.subr.mxu0 0.0
      %908 = vmatpush1.xpose.msra.mxu0 0.0
      %909 = vmatprep.subr.mxu0 0.0
      %910 = vmatpush1.xpose.msra.mxu0 0.0
      %911 = vmatprep.subr.mxu0 0.0
      %912 = vmatpush1.xpose.msra.mxu0 0.0
      %913 = vmatprep.subr.mxu0 0.0
      %914 = vmatpush1.xpose.msra.mxu0 0.0
      %915 = vmatprep.subr.mxu0 0.0
      %916 = vmatpush1.xpose.msra.mxu0 0.0
      %917 = vmatprep.subr.mxu0 0.0
      %918 = vmatpush1.xpose.msra.mxu0 0.0
      %919 = vmatprep.subr.mxu0 0.0
      %920 = vmatpush1.xpose.msra.mxu0 %v887
      %921 = vmatprep.subr.mxu0 0.0
      %922 = vmatpush2.xpose.msra.mxu0 0.0
      %923 = vmatprep.subr.mxu0 0.0
      %924 = vmatpush2.xpose.msra.mxu0 0.0
      %925 = vmatprep.subr.mxu0 0.0
      %926 = vmatpush2.xpose.msra.mxu0 0.0
      %927 = vmatprep.subr.mxu0 0.0
      %928 = vmatpush2.xpose.msra.mxu0 0.0
      %929 = vmatprep.subr.mxu0 0.0
      %930 = vmatpush2.xpose.msra.mxu0 0.0
      %931 = vmatprep.subr.mxu0 0.0
      %932 = vmatpush2.xpose.msra.mxu0 0.0
      %933 = vmatprep.subr.mxu0 0.0
      %934 = vmatpush2.xpose.msra.mxu0 0.0
      %935 = vmatprep.subr.mxu0 0.0
      %936 = vmatpush2.xpose.msra.mxu0 0.0
      %937 = vmatprep.subr.mxu0 0.0
      %938 = vmatpush2.xpose.msra.mxu0 0.0
      %939 = vmatprep.subr.mxu0 0.0
      %940 = vmatpush2.xpose.msra.mxu0 0.0
      %941 = vmatprep.subr.mxu0 0.0
      %942 = vmatpush2.xpose.msra.mxu0 0.0
      %943 = vmatprep.subr.mxu0 0.0
      %944 = vmatpush2.xpose.msra.mxu0 0.0
      %945 = vmatprep.subr.mxu0 0.0
      %946 = vmatpush2.xpose.msra.mxu0 0.0
      %947 = vmatprep.subr.mxu0 0.0
      %948 = vmatpush2.xpose.msra.mxu0 0.0
      %949 = vmatprep.subr.mxu0 0.0
      %950 = vmatpush2.xpose.msra.mxu0 0.0
      %951 = vmatprep.subr.mxu0 0.0
      %952 = vmatpush2.xpose.msra.mxu0 0.0
      %953 = vmatprep.mubr.f32.mxu0 0.0
      %954 = vmatmul.mubr.f32.gmra.mxu0 %v492
      %v955 = vpop.f32.mrf.mxu0
      %v956 = vadd.f32 0.0, %v955
      %v957 = vpop.f32.mrf.mxu0
      %958 = vdwg.mxu0
      %s959 = scalar_lea.vmem %s6, 4
      %v960 = vld [vmem:[%s959] sm:$0x7]
      %v962 = vsel %vm412, %v960, 0
      %964 = vmatprep.subr.mxu0 0.0
      %965 = vmatpush1.xpose.msra.mxu0 0.0
      %966 = vmatprep.subr.mxu0 0.0
      %967 = vmatpush1.xpose.msra.mxu0 0.0
      %968 = vmatprep.subr.mxu0 0.0
      %969 = vmatpush1.xpose.msra.mxu0 0.0
      %970 = vmatprep.subr.mxu0 0.0
      %971 = vmatpush1.xpose.msra.mxu0 0.0
      %972 = vmatprep.subr.mxu0 0.0
      %973 = vmatpush1.xpose.msra.mxu0 0.0
      %974 = vmatprep.subr.mxu0 0.0
      %975 = vmatpush1.xpose.msra.mxu0 0.0
      %976 = vmatprep.subr.mxu0 0.0
      %977 = vmatpush1.xpose.msra.mxu0 0.0
      %978 = vmatprep.subr.mxu0 0.0
      %979 = vmatpush1.xpose.msra.mxu0 0.0
      %980 = vmatprep.subr.mxu0 0.0
      %981 = vmatpush1.xpose.msra.mxu0 0.0
      %982 = vmatprep.subr.mxu0 0.0
      %983 = vmatpush1.xpose.msra.mxu0 0.0
      %984 = vmatprep.subr.mxu0 0.0
      %985 = vmatpush1.xpose.msra.mxu0 0.0
      %986 = vmatprep.subr.mxu0 0.0
      %987 = vmatpush1.xpose.msra.mxu0 0.0
      %988 = vmatprep.subr.mxu0 0.0
      %989 = vmatpush1.xpose.msra.mxu0 0.0
      %990 = vmatprep.subr.mxu0 0.0
      %991 = vmatpush1.xpose.msra.mxu0 0.0
      %992 = vmatprep.subr.mxu0 0.0
      %993 = vmatpush1.xpose.msra.mxu0 0.0
      %994 = vmatprep.subr.mxu0 0.0
      %995 = vmatpush1.xpose.msra.mxu0 %v962
      %996 = vmatprep.subr.mxu0 0.0
      %997 = vmatpush2.xpose.msra.mxu0 0.0
      %998 = vmatprep.subr.mxu0 0.0
      %999 = vmatpush2.xpose.msra.mxu0 0.0
      %1000 = vmatprep.subr.mxu0 0.0
      %1001 = vmatpush2.xpose.msra.mxu0 0.0
      %1002 = vmatprep.subr.mxu0 0.0
      %1003 = vmatpush2.xpose.msra.mxu0 0.0
      %1004 = vmatprep.subr.mxu0 0.0
      %1005 = vmatpush2.xpose.msra.mxu0 0.0
      %1006 = vmatprep.subr.mxu0 0.0
      %1007 = vmatpush2.xpose.msra.mxu0 0.0
      %1008 = vmatprep.subr.mxu0 0.0
      %1009 = vmatpush2.xpose.msra.mxu0 0.0
      %1010 = vmatprep.subr.mxu0 0.0
      %1011 = vmatpush2.xpose.msra.mxu0 0.0
      %1012 = vmatprep.subr.mxu0 0.0
      %1013 = vmatpush2.xpose.msra.mxu0 0.0
      %1014 = vmatprep.subr.mxu0 0.0
      %1015 = vmatpush2.xpose.msra.mxu0 0.0
      %1016 = vmatprep.subr.mxu0 0.0
      %1017 = vmatpush2.xpose.msra.mxu0 0.0
      %1018 = vmatprep.subr.mxu0 0.0
      %1019 = vmatpush2.xpose.msra.mxu0 0.0
      %1020 = vmatprep.subr.mxu0 0.0
      %1021 = vmatpush2.xpose.msra.mxu0 0.0
      %1022 = vmatprep.subr.mxu0 0.0
      %1023 = vmatpush2.xpose.msra.mxu0 0.0
      %1024 = vmatprep.subr.mxu0 0.0
      %1025 = vmatpush2.xpose.msra.mxu0 0.0
      %1026 = vmatprep.subr.mxu0 0.0
      %1027 = vmatpush2.xpose.msra.mxu0 0.0
      %1028 = vmatprep.mubr.f32.mxu0 0.0
      %1029 = vmatmul.mubr.f32.gmra.mxu0 %v569
      %v1030 = vpop.f32.mrf.mxu0
      %v1031 = vadd.f32 0.0, %v1030
      %v1032 = vpop.f32.mrf.mxu0
      %1033 = vdwg.mxu0
      %v1035 = vsel %vm644, %v883, 0
      %v1038 = vsel %vm644, %v956, 0
      %1040 = vmatprep.subr.mxu0 0.0
      %1041 = vmatpush1.xpose.msra.mxu0 0.0
      %1042 = vmatprep.subr.mxu0 0.0
      %1043 = vmatpush1.xpose.msra.mxu0 0.0
      %1044 = vmatprep.subr.mxu0 0.0
      %1045 = vmatpush1.xpose.msra.mxu0 0.0
      %1046 = vmatprep.subr.mxu0 0.0
      %1047 = vmatpush1.xpose.msra.mxu0 0.0
      %1048 = vmatprep.subr.mxu0 0.0
      %1049 = vmatpush1.xpose.msra.mxu0 0.0
      %1050 = vmatprep.subr.mxu0 0.0
      %1051 = vmatpush1.xpose.msra.mxu0 0.0
      %1052 = vmatprep.subr.mxu0 0.0
      %1053 = vmatpush1.xpose.msra.mxu0 0.0
      %1054 = vmatprep.subr.mxu0 0.0
      %1055 = vmatpush1.xpose.msra.mxu0 0.0
      %1056 = vmatprep.subr.mxu0 0.0
      %1057 = vmatpush1.xpose.msra.mxu0 0.0
      %1058 = vmatprep.subr.mxu0 0.0
      %1059 = vmatpush1.xpose.msra.mxu0 0.0
      %1060 = vmatprep.subr.mxu0 0.0
      %1061 = vmatpush1.xpose.msra.mxu0 0.0
      %1062 = vmatprep.subr.mxu0 0.0
      %1063 = vmatpush1.xpose.msra.mxu0 0.0
      %1064 = vmatprep.subr.mxu0 0.0
      %1065 = vmatpush1.xpose.msra.mxu0 0.0
      %1066 = vmatprep.subr.mxu0 0.0
      %1067 = vmatpush1.xpose.msra.mxu0 0.0
      %1068 = vmatprep.subr.mxu0 0.0
      %1069 = vmatpush1.xpose.msra.mxu0 0.0
      %1070 = vmatprep.subr.mxu0 0.0
      %1071 = vmatpush1.xpose.msra.mxu0 %v1038
      %1072 = vmatprep.subr.mxu0 0.0
      %1073 = vmatpush2.xpose.msra.mxu0 0.0
      %1074 = vmatprep.subr.mxu0 0.0
      %1075 = vmatpush2.xpose.msra.mxu0 0.0
      %1076 = vmatprep.subr.mxu0 0.0
      %1077 = vmatpush2.xpose.msra.mxu0 0.0
      %1078 = vmatprep.subr.mxu0 0.0
      %1079 = vmatpush2.xpose.msra.mxu0 0.0
      %1080 = vmatprep.subr.mxu0 0.0
      %1081 = vmatpush2.xpose.msra.mxu0 0.0
      %1082 = vmatprep.subr.mxu0 0.0
      %1083 = vmatpush2.xpose.msra.mxu0 0.0
      %1084 = vmatprep.subr.mxu0 0.0
      %1085 = vmatpush2.xpose.msra.mxu0 0.0
      %1086 = vmatprep.subr.mxu0 0.0
      %1087 = vmatpush2.xpose.msra.mxu0 0.0
      %1088 = vmatprep.subr.mxu0 0.0
      %1089 = vmatpush2.xpose.msra.mxu0 0.0
      %1090 = vmatprep.subr.mxu0 0.0
      %1091 = vmatpush2.xpose.msra.mxu0 0.0
      %1092 = vmatprep.subr.mxu0 0.0
      %1093 = vmatpush2.xpose.msra.mxu0 0.0
      %1094 = vmatprep.subr.mxu0 0.0
      %1095 = vmatpush2.xpose.msra.mxu0 0.0
      %1096 = vmatprep.subr.mxu0 0.0
      %1097 = vmatpush2.xpose.msra.mxu0 0.0
      %1098 = vmatprep.subr.mxu0 0.0
      %1099 = vmatpush2.xpose.msra.mxu0 0.0
      %1100 = vmatprep.subr.mxu0 0.0
      %1101 = vmatpush2.xpose.msra.mxu0 0.0
      %1102 = vmatprep.subr.mxu0 0.0
      %1103 = vmatpush2.xpose.msra.mxu0 0.0
      %1104 = vmatprep.mubr.f32.mxu0 0.0
      %1105 = vmatmul.mubr.f32.gmra.mxu0 %v1035
      %v1106 = vpop.f32.mrf.mxu0
      %v1107 = vadd.f32 0.0, %v1106
      %v1108 = vpop.f32.mrf.mxu0
      %1109 = vdwg.mxu0
      %v1110 = vsel %vm410, -1e+09, %v1107
      %v1111 = vsel %vm722, %v1110, -inf
      %1112 = vmax.xlane.f32.xlu0 %v1111
      %v1113 = vpop.xlane.xlu0 %1112
      %v1114 = vsub.f32 %v1110, %v1113
      %v1115 = vmul.f32 %v1114, 1.442695
      %v1116 = vpow.pop %v1115
      %v1117 = vsel %vm722, %v1116, 0.0
      %1118 = vadd.xlane.f32.xlu0 %v1117
      %v1119 = vpop.xlane.xlu0 %1118
      %v1121 = vsel %vm722, %v1116, 0
      %1123 = vmatprep.subr.mxu0 0.0
      %1124 = vmatpush1.msra.mxu0 0.0
      %1125 = vmatprep.subr.mxu0 0.0
      %1126 = vmatpush1.msra.mxu0 0.0
      %1127 = vmatprep.subr.mxu0 0.0
      %1128 = vmatpush1.msra.mxu0 0.0
      %1129 = vmatprep.subr.mxu0 0.0
      %1130 = vmatpush1.msra.mxu0 0.0
      %1131 = vmatprep.subr.mxu0 0.0
      %1132 = vmatpush1.msra.mxu0 0.0
      %1133 = vmatprep.subr.mxu0 0.0
      %1134 = vmatpush1.msra.mxu0 0.0
      %1135 = vmatprep.subr.mxu0 0.0
      %1136 = vmatpush1.msra.mxu0 0.0
      %1137 = vmatprep.subr.mxu0 0.0
      %1138 = vmatpush1.msra.mxu0 0.0
      %1139 = vmatprep.subr.mxu0 0.0
      %1140 = vmatpush1.msra.mxu0 0.0
      %1141 = vmatprep.subr.mxu0 0.0
      %1142 = vmatpush1.msra.mxu0 0.0
      %1143 = vmatprep.subr.mxu0 0.0
      %1144 = vmatpush1.msra.mxu0 0.0
      %1145 = vmatprep.subr.mxu0 0.0
      %1146 = vmatpush1.msra.mxu0 0.0
      %1147 = vmatprep.subr.mxu0 0.0
      %1148 = vmatpush1.msra.mxu0 0.0
      %1149 = vmatprep.subr.mxu0 0.0
      %1150 = vmatpush1.msra.mxu0 0.0
      %1151 = vmatprep.subr.mxu0 0.0
      %1152 = vmatpush1.msra.mxu0 0.0
      %1153 = vmatprep.subr.mxu0 0.0
      %1154 = vmatpush1.msra.mxu0 %v1031
      %1155 = vmatprep.subr.mxu0 0.0
      %1156 = vmatpush2.msra.mxu0 0.0
      %1157 = vmatprep.subr.mxu0 0.0
      %1158 = vmatpush2.msra.mxu0 0.0
      %1159 = vmatprep.subr.mxu0 0.0
      %1160 = vmatpush2.msra.mxu0 0.0
      %1161 = vmatprep.subr.mxu0 0.0
      %1162 = vmatpush2.msra.mxu0 0.0
      %1163 = vmatprep.subr.mxu0 0.0
      %1164 = vmatpush2.msra.mxu0 0.0
      %1165 = vmatprep.subr.mxu0 0.0
      %1166 = vmatpush2.msra.mxu0 0.0
      %1167 = vmatprep.subr.mxu0 0.0
      %1168 = vmatpush2.msra.mxu0 0.0
      %1169 = vmatprep.subr.mxu0 0.0
      %1170 = vmatpush2.msra.mxu0 0.0
      %1171 = vmatprep.subr.mxu0 0.0
      %1172 = vmatpush2.msra.mxu0 0.0
      %1173 = vmatprep.subr.mxu0 0.0
      %1174 = vmatpush2.msra.mxu0 0.0
      %1175 = vmatprep.subr.mxu0 0.0
      %1176 = vmatpush2.msra.mxu0 0.0
      %1177 = vmatprep.subr.mxu0 0.0
      %1178 = vmatpush2.msra.mxu0 0.0
      %1179 = vmatprep.subr.mxu0 0.0
      %1180 = vmatpush2.msra.mxu0 0.0
      %1181 = vmatprep.subr.mxu0 0.0
      %1182 = vmatpush2.msra.mxu0 0.0
      %1183 = vmatprep.subr.mxu0 0.0
      %1184 = vmatpush2.msra.mxu0 0.0
      %1185 = vmatprep.subr.mxu0 0.0
      %1186 = vmatpush2.msra.mxu0 0.0
      %1187 = vmatprep.mubr.f32.mxu0 0.0
      %1188 = vmatmul.mubr.f32.gmra.mxu0 %v1121
      %v1189 = vpop.f32.mrf.mxu0
      %v1190 = vadd.f32 0.0, %v1189
      %v1191 = vpop.f32.mrf.mxu0
      %1192 = vdwg.mxu0
      %v1193 = vrcp.pop %v1119
      %v1194 = vmul.f32 %v1190, %v1193
      %s1195 = scalar_lea.vmem %s7, 8
      %v1196 = vld [vmem:[%s1195] sm:$0x3f]
      %v1198 = vsel %vm644, %v1194, 0
      %v1201 = vsel %vm644, %v1196, 0
      %1203 = vmatprep.subr.mxu0 0.0
      %1204 = vmatpush1.xpose.msra.mxu0 0.0
      %1205 = vmatprep.subr.mxu0 0.0
      %1206 = vmatpush1.xpose.msra.mxu0 0.0
      %1207 = vmatprep.subr.mxu0 0.0
      %1208 = vmatpush1.xpose.msra.mxu0 0.0
      %1209 = vmatprep.subr.mxu0 0.0
      %1210 = vmatpush1.xpose.msra.mxu0 0.0
      %1211 = vmatprep.subr.mxu0 0.0
      %1212 = vmatpush1.xpose.msra.mxu0 0.0
      %1213 = vmatprep.subr.mxu0 0.0
      %1214 = vmatpush1.xpose.msra.mxu0 0.0
      %1215 = vmatprep.subr.mxu0 0.0
      %1216 = vmatpush1.xpose.msra.mxu0 0.0
      %1217 = vmatprep.subr.mxu0 0.0
      %1218 = vmatpush1.xpose.msra.mxu0 0.0
      %1219 = vmatprep.subr.mxu0 0.0
      %1220 = vmatpush1.xpose.msra.mxu0 0.0
      %1221 = vmatprep.subr.mxu0 0.0
      %1222 = vmatpush1.xpose.msra.mxu0 0.0
      %1223 = vmatprep.subr.mxu0 0.0
      %1224 = vmatpush1.xpose.msra.mxu0 0.0
      %1225 = vmatprep.subr.mxu0 0.0
      %1226 = vmatpush1.xpose.msra.mxu0 0.0
      %1227 = vmatprep.subr.mxu0 0.0
      %1228 = vmatpush1.xpose.msra.mxu0 0.0
      %1229 = vmatprep.subr.mxu0 0.0
      %1230 = vmatpush1.xpose.msra.mxu0 0.0
      %1231 = vmatprep.subr.mxu0 0.0
      %1232 = vmatpush1.xpose.msra.mxu0 0.0
      %1233 = vmatprep.subr.mxu0 0.0
      %1234 = vmatpush1.xpose.msra.mxu0 %v1201
      %1235 = vmatprep.subr.mxu0 0.0
      %1236 = vmatpush2.xpose.msra.mxu0 0.0
      %1237 = vmatprep.subr.mxu0 0.0
      %1238 = vmatpush2.xpose.msra.mxu0 0.0
      %1239 = vmatprep.subr.mxu0 0.0
      %1240 = vmatpush2.xpose.msra.mxu0 0.0
      %1241 = vmatprep.subr.mxu0 0.0
      %1242 = vmatpush2.xpose.msra.mxu0 0.0
      %1243 = vmatprep.subr.mxu0 0.0
      %1244 = vmatpush2.xpose.msra.mxu0 0.0
      %1245 = vmatprep.subr.mxu0 0.0
      %1246 = vmatpush2.xpose.msra.mxu0 0.0
      %1247 = vmatprep.subr.mxu0 0.0
      %1248 = vmatpush2.xpose.msra.mxu0 0.0
      %1249 = vmatprep.subr.mxu0 0.0
      %1250 = vmatpush2.xpose.msra.mxu0 0.0
      %1251 = vmatprep.subr.mxu0 0.0
      %1252 = vmatpush2.xpose.msra.mxu0 0.0
      %1253 = vmatprep.subr.mxu0 0.0
      %1254 = vmatpush2.xpose.msra.mxu0 0.0
      %1255 = vmatprep.subr.mxu0 0.0
      %1256 = vmatpush2.xpose.msra.mxu0 0.0
      %1257 = vmatprep.subr.mxu0 0.0
      %1258 = vmatpush2.xpose.msra.mxu0 0.0
      %1259 = vmatprep.subr.mxu0 0.0
      %1260 = vmatpush2.xpose.msra.mxu0 0.0
      %1261 = vmatprep.subr.mxu0 0.0
      %1262 = vmatpush2.xpose.msra.mxu0 0.0
      %1263 = vmatprep.subr.mxu0 0.0
      %1264 = vmatpush2.xpose.msra.mxu0 0.0
      %1265 = vmatprep.subr.mxu0 0.0
      %1266 = vmatpush2.xpose.msra.mxu0 0.0
      %1267 = vmatprep.mubr.f32.mxu0 0.0
      %1268 = vmatmul.mubr.f32.gmra.mxu0 %v1198
      %v1269 = vpop.f32.mrf.mxu0
      %v1270 = vadd.f32 0.0, %v1269
      %v1271 = vpop.f32.mrf.mxu0
      %1272 = vdwg.mxu0
      %v1274 = vsel %vm644, %v806, 0
      %v1277 = vsel %vm644, %v807, 0
      %1279 = vmatprep.subr.mxu0 0.0
      %1280 = vmatpush1.xpose.msra.mxu0 0.0
      %1281 = vmatprep.subr.mxu0 0.0
      %1282 = vmatpush1.xpose.msra.mxu0 0.0
      %1283 = vmatprep.subr.mxu0 0.0
      %1284 = vmatpush1.xpose.msra.mxu0 0.0
      %1285 = vmatprep.subr.mxu0 0.0
      %1286 = vmatpush1.xpose.msra.mxu0 0.0
      %1287 = vmatprep.subr.mxu0 0.0
      %1288 = vmatpush1.xpose.msra.mxu0 0.0
      %1289 = vmatprep.subr.mxu0 0.0
      %1290 = vmatpush1.xpose.msra.mxu0 0.0
      %1291 = vmatprep.subr.mxu0 0.0
      %1292 = vmatpush1.xpose.msra.mxu0 0.0
      %1293 = vmatprep.subr.mxu0 0.0
      %1294 = vmatpush1.xpose.msra.mxu0 0.0
      %1295 = vmatprep.subr.mxu0 0.0
      %1296 = vmatpush1.xpose.msra.mxu0 0.0
      %1297 = vmatprep.subr.mxu0 0.0
      %1298 = vmatpush1.xpose.msra.mxu0 0.0
      %1299 = vmatprep.subr.mxu0 0.0
      %1300 = vmatpush1.xpose.msra.mxu0 0.0
      %1301 = vmatprep.subr.mxu0 0.0
      %1302 = vmatpush1.xpose.msra.mxu0 0.0
      %1303 = vmatprep.subr.mxu0 0.0
      %1304 = vmatpush1.xpose.msra.mxu0 0.0
      %1305 = vmatprep.subr.mxu0 0.0
      %1306 = vmatpush1.xpose.msra.mxu0 0.0
      %1307 = vmatprep.subr.mxu0 0.0
      %1308 = vmatpush1.xpose.msra.mxu0 0.0
      %1309 = vmatprep.subr.mxu0 0.0
      %1310 = vmatpush1.xpose.msra.mxu0 %v1277
      %1311 = vmatprep.subr.mxu0 0.0
      %1312 = vmatpush2.xpose.msra.mxu0 0.0
      %1313 = vmatprep.subr.mxu0 0.0
      %1314 = vmatpush2.xpose.msra.mxu0 0.0
      %1315 = vmatprep.subr.mxu0 0.0
      %1316 = vmatpush2.xpose.msra.mxu0 0.0
      %1317 = vmatprep.subr.mxu0 0.0
      %1318 = vmatpush2.xpose.msra.mxu0 0.0
      %1319 = vmatprep.subr.mxu0 0.0
      %1320 = vmatpush2.xpose.msra.mxu0 0.0
      %1321 = vmatprep.subr.mxu0 0.0
      %1322 = vmatpush2.xpose.msra.mxu0 0.0
      %1323 = vmatprep.subr.mxu0 0.0
      %1324 = vmatpush2.xpose.msra.mxu0 0.0
      %1325 = vmatprep.subr.mxu0 0.0
      %1326 = vmatpush2.xpose.msra.mxu0 0.0
      %1327 = vmatprep.subr.mxu0 0.0
      %1328 = vmatpush2.xpose.msra.mxu0 0.0
      %1329 = vmatprep.subr.mxu0 0.0
      %1330 = vmatpush2.xpose.msra.mxu0 0.0
      %1331 = vmatprep.subr.mxu0 0.0
      %1332 = vmatpush2.xpose.msra.mxu0 0.0
      %1333 = vmatprep.subr.mxu0 0.0
      %1334 = vmatpush2.xpose.msra.mxu0 0.0
      %1335 = vmatprep.subr.mxu0 0.0
      %1336 = vmatpush2.xpose.msra.mxu0 0.0
      %1337 = vmatprep.subr.mxu0 0.0
      %1338 = vmatpush2.xpose.msra.mxu0 0.0
      %1339 = vmatprep.subr.mxu0 0.0
      %1340 = vmatpush2.xpose.msra.mxu0 0.0
      %1341 = vmatprep.subr.mxu0 0.0
      %1342 = vmatpush2.xpose.msra.mxu0 0.0
      %1343 = vmatprep.mubr.f32.mxu0 0.0
      %1344 = vmatmul.mubr.f32.gmra.mxu0 %v1274
      %v1345 = vpop.f32.mrf.mxu0
      %v1346 = vadd.f32 %v1270, %v1345
      %v1347 = vpop.f32.mrf.mxu0
      %1348 = vdwg.mxu0
      %v1349 = vadd.f32 %v406, %v1346
      %v1350 = vsel %vm412, %v1349, 0.0
      %1351 = vadd.xlane.f32.xlu0 %v1350
      %v1352 = vpop.xlane.xlu0 %1351
      %v1353 = vrcp.pop 6.0
      %v1354 = vmul.f32 %v1352, %v1353
      %v1355 = vsub.f32 %v1349, %v1354
      %v1356 = vmul.f32 %v1355, %v1355
      %v1357 = vsel %vm412, %v1356, 0.0
      %1358 = vadd.xlane.f32.xlu0 %v1357
      %v1359 = vpop.xlane.xlu0 %1358
      %v1360 = vmul.f32 %v1359, %v1353
      %v1361 = vadd.f32 %v1360, 1e-05
      %v1362 = vrsqrt.pop %v1361
      %v1363 = vmul.f32 %v1355, %v1362
      %v1364 = vld [vmem:[%s8] sm:$0x1]
      %v1366 = vlaneseq
      %v1367 = vshrl.u32 %v1366, 7
      %v1368 = vsub.s32 0, %v1367
      %v1369 = vrot.slane %v1364, %v1368
      %v1371 = vmul.f32 %v1363, %v1369
      %v1372 = vld [vmem:[%s9] sm:$0x1]
      %v1374 = vlaneseq
      %v1375 = vshrl.u32 %v1374, 7
      %v1376 = vsub.s32 0, %v1375
      %v1377 = vrot.slane %v1372, %v1376
      %v1379 = vadd.f32 %v1371, %v1377
      %1380 = vst.msk [vmem:[%s405] sm:$0xff] %vm412, %v1379
      %p1381 = scmp.lt.s32.totalorder %s21, 1
      %s1382 = scalar_select %p1381, %s21, 1
      %s1383 = smul.addr %s1382, 8
      %s1384 = scalar_lea.vmem %s10, %s1383
      // Predicated region
      $region61: #{tpu_custom_call.1} parent=59 // pred_check
        %p1385 = pneg %p269
      $region62: #{tpu_custom_call.1} parent=59 // pred_check_branch
        %1387 = sbr.rel (%p1385) target = $region64
      $region63: #{tpu_custom_call.1} parent=59 // pred_region
        _
      $region64: #{tpu_custom_call.1} parent=59 // pred_fallthru
        _
    $region60: #{tpu_custom_call.1} parent=5 // pred_fallthru
      _
    %p1388 = scmp.le.s32.totalorder 2, %s16
    // Predicated region
    $region65: #{tpu_custom_call.1} parent=5 // pred_check
      %p1389 = pneg %p1388
    $region66: #{tpu_custom_call.1} parent=5 // pred_check_branch
      %1391 = sbr.rel (%p1389) target = $region68
    $region67: #{tpu_custom_call.1} parent=5 // pred_region
      %s1392 = ssub.s32 %s16, 2
      // Predicated region
      $region69: #{tpu_custom_call.1} parent=67 // pred_check
        %p1393 = pneg %p275
      $region70: #{tpu_custom_call.1} parent=67 // pred_check_branch
        %1395 = sbr.rel (%p1393) target = $region72
      $region71: #{tpu_custom_call.1} parent=67 // pred_region
        %p1396 = scmp.lt.s32.totalorder %s22, 1
        %s1397 = scalar_select %p1396, %s22, 1
        %s1398 = smul.addr %s1397, 8
        %s1399 = scalar_lea.vmem %s10, %s1398
      $region72: #{tpu_custom_call.1} parent=67 // pred_fallthru
        _
    $region68: #{tpu_custom_call.1} parent=5 // pred_fallthru
      _
  $region6: #{tpu_custom_call.1} parent=0 // loop_footer
    %s20 = sadd.s32 1, %s16
  $region7: #{tpu_custom_call.1} parent=0 // loop_footer_branch
    %15 = sbr.rel target = $region3
  $region8: #{tpu_custom_call.1} parent=0 // loop_exit
    _

</llo_original>
